<compile_context>
chip_gen: v6e
topology: v6e:2x2x1
jax: 0.10.0
libtpu: 0.0.40
codegen_flags: <defaults>
</compile_context>

<pallas_src>
import functools

import jax
import jax.numpy as jnp
from jax.experimental import pallas as pl
from jax.experimental.pallas import tpu as pltpu


def _round_up(x, m):
    return (x + m - 1) // m * m


def _embeddings_kernel(ids_ref,        # SMEM (B, S_pad) int32   (scalar prefetch)
                       item_hbm_ref,   # ANY  (V, H) f32         (full table, untiled)
                       pos_ref,        # VMEM (TS, H) f32        (positions for this tile)
                       gamma_ref,      # VMEM (1, H) f32
                       beta_ref,       # VMEM (1, H) f32
                       out_ref,        # VMEM (1, TS, H)
                       gathered,       # VMEM scratch (TS, H) f32
                       sem,            # DMA semaphore (1,)
                       *, seq_tile, vocab_size, eps):
    b = pl.program_id(0)
    si = pl.program_id(1)

    # ---- Embedding gather: one row DMA per token.  Issue all copies first so
    # the DMA engine overlaps them, then wait for all before reading `gathered`.
    copies = []
    for t in range(seq_tile):                      # static trip count -> unrolled
        tok = ids_ref[b, si * seq_tile + t]
        # Clamp so a bad id can never DMA out of bounds.  (PyTorch would raise;
        # padding_idx=0 correctness relies on the caller zeroing row 0.)
        tok = jnp.clip(tok, 0, vocab_size - 1)
        cp = pltpu.make_async_copy(item_hbm_ref.at[pl.ds(tok, 1), :],
                                   gathered.at[pl.ds(t, 1), :],
                                   sem.at[0])
        cp.start()
        copies.append(cp)
    for cp in copies:
        cp.wait()

    # ---- add position embeddings ----
    x = gathered[...] + pos_ref[...]               # (TS, H) f32

    # ---- LayerNorm over hidden axis, one-pass variance, f32 VPU math ----
    u = jnp.mean(x, axis=-1, keepdims=True)
    var = jnp.mean(x * x, axis=-1, keepdims=True) - u * u
    x_hat = (x - u) * jax.lax.rsqrt(var + eps)

    # Affine; dropout is identity in eval mode.
    out_ref[0] = (gamma_ref[...] * x_hat + beta_ref[...]).astype(out_ref.dtype)


def embeddings_forward(input_ids, item_table, pos_table, ln_weight, ln_bias,
                       *, eps=1e-12, out_dtype=jnp.float32):
    """input_ids: (B, S) int32.  Returns (B, S, H) in `out_dtype` (default f32)."""
    B, S = input_ids.shape
    V, H = item_table.shape

    seq_tile = min(128, _round_up(S, 8))           # f32 sublane multiple, <=128 tokens/step
    S_pad = _round_up(S, seq_tile)

    # Glue: pad ids with 0 (the padding row) and positions with zeros; the
    # padded rows are sliced off after the call.
    ids = jnp.zeros((B, S_pad), jnp.int32).at[:, :S].set(input_ids.astype(jnp.int32))
    pos = jnp.zeros((S_pad, H), jnp.float32).at[:S, :].set(
        pos_table[:S].astype(jnp.float32))
    gamma = ln_weight.reshape(1, H).astype(jnp.float32)
    beta = ln_bias.reshape(1, H).astype(jnp.float32)

    kernel = functools.partial(_embeddings_kernel, seq_tile=seq_tile,
                               vocab_size=V, eps=eps)

    grid_spec = pltpu.PrefetchScalarGridSpec(
        num_scalar_prefetch=1,                     # ids -> SMEM, scalar path only
        grid=(B, S_pad // seq_tile),
        in_specs=[
            pl.BlockSpec(memory_space=pl.ANY),                          # item table (HBM)
            pl.BlockSpec((seq_tile, H), lambda b, si, ids: (si, 0)),    # positions
            pl.BlockSpec((1, H), lambda b, si, ids: (0, 0)),            # gamma (resident)
            pl.BlockSpec((1, H), lambda b, si, ids: (0, 0)),            # beta  (resident)
        ],
        out_specs=pl.BlockSpec((1, seq_tile, H), lambda b, si, ids: (b, si, 0)),
        scratch_shapes=[pltpu.VMEM((seq_tile, H), jnp.float32),
                        pltpu.SemaphoreType.DMA((1,))],
    )

    out = pl.pallas_call(
        kernel,
        grid_spec=grid_spec,
        out_shape=jax.ShapeDtypeStruct((B, S_pad, H), out_dtype),
        compiler_params=pltpu.CompilerParams(
            dimension_semantics=("parallel", "parallel")),
    )(ids, item_table.astype(jnp.float32), pos, gamma, beta)

    return out[:, :S, :]


def _reference_forward(input_ids, item_table, pos_table, ln_weight, ln_bias):
    """Pure-JAX reference mirroring the PyTorch forward (eval mode)."""
    S = input_ids.shape[1]
    item_emb = item_table[input_ids]                      # padding row 0 is zeros
    pos_emb = pos_table[jnp.arange(S)][None, :, :]
    x = item_emb + pos_emb
    u = x.mean(-1, keepdims=True)
    s = ((x - u) ** 2).mean(-1, keepdims=True)
    x = (x - u) / jnp.sqrt(s + 1e-12)
    return ln_weight * x + ln_bias


if __name__ == "__main__":
    # "args" for the module, small shapes.
    batch = 2
    seq_len = 8            # <= max_seq_length
    hidden_size = 32
    item_size = 50
    max_seq_length = 16

    key = jax.random.PRNGKey(0)
    k_ids, k_item, k_pos = jax.random.split(key, 3)

    # Deterministic parameter init (nn.Embedding-style ~N(0, 0.02)).
    item_table = 0.02 * jax.random.normal(k_item, (item_size, hidden_size),
                                          dtype=jnp.float32)
    item_table = item_table.at[0].set(0.0)   # padding_idx=0 -> zero row
    pos_table = 0.02 * jax.random.normal(k_pos, (max_seq_length, hidden_size),
                                         dtype=jnp.float32)
    ln_weight = jnp.ones((hidden_size,), dtype=jnp.float32)
    ln_bias = jnp.zeros((hidden_size,), dtype=jnp.float32)

    # Token ids in [0, item_size); force a couple of padding (0) tokens.
    input_ids = jax.random.randint(k_ids, (batch, seq_len), 0, item_size,
                                   dtype=jnp.int32)
    input_ids = input_ids.at[0, 0].set(0).at[1, -1].set(0)

    out = embeddings_forward(input_ids, item_table, pos_table, ln_weight, ln_bias)
    out = jax.block_until_ready(out)

    ref = _reference_forward(input_ids, item_table, pos_table, ln_weight, ln_bias)
    assert out.shape == (batch, seq_len, hidden_size)
    assert jnp.allclose(out, ref, atol=1e-5, rtol=1e-5)

    print("KERNEL_OK")
</pallas_src>

<mosaic_0001>
module attributes {stable_mosaic.version = 11 : i64} {
  func.func @_embeddings_kernel(%arg0: i32, %arg1: i32, %arg2: memref<2x8xi32, #tpu.memory_space<smem>>, %arg3: memref<50x32xf32, #tpu.memory_space<any>>, %arg4: memref<8x32xf32, #tpu.memory_space<vmem>>, %arg5: memref<1x32xf32, #tpu.memory_space<vmem>>, %arg6: memref<1x32xf32, #tpu.memory_space<vmem>>, %arg7: memref<1x8x32xf32, #tpu.memory_space<vmem>>, %arg8: memref<8x32xf32, #tpu.memory_space<vmem>>, %arg9: memref<1x!tpu.dma_semaphore, #tpu.memory_space<semaphore_mem>>) attributes {dimension_semantics = [#tpu.dimension_semantics<parallel>, #tpu.dimension_semantics<parallel>], iteration_bounds = array<i64: 2, 1>, scalar_prefetch = 1 : i64, scratch_operands = 2 : i64, tpu.core_type = #tpu.core_type<tc>, window_params = [{}, {transform_indices = @transform_1, window_bounds = array<i64: 8, 32>}, {pipeline_mode = #tpu.pipeline_mode<synchronous>, transform_indices = @transform_2, window_bounds = array<i64: 1, 32>}, {pipeline_mode = #tpu.pipeline_mode<synchronous>, transform_indices = @transform_3, window_bounds = array<i64: 1, 32>}, {transform_indices = @transform_4, window_bounds = array<i64: 1, 8, 32>}]} {
    %c8_i32 = arith.constant 8 : i32
    %0 = arith.muli %arg1, %c8_i32 : i32
    %c0_i32 = arith.constant 0 : i32
    %1 = arith.addi %0, %c0_i32 : i32
    %2 = arith.index_cast %arg0 : i32 to index
    %3 = arith.index_cast %1 : i32 to index
    %4 = memref.load %arg2[%2, %3] : memref<2x8xi32, #tpu.memory_space<smem>>
    %c0_i32_0 = arith.constant 0 : i32
    %c49_i32 = arith.constant 49 : i32
    %5 = arith.maxsi %c0_i32_0, %4 : i32
    %6 = arith.minsi %c49_i32, %5 : i32
    %c0_i32_1 = arith.constant 0 : i32
    %c0_i32_2 = arith.constant 0 : i32
    %7 = tpu.memref_slice %arg3[%6, %c0_i32_2] : memref<50x32xf32, #tpu.memory_space<any>> -> memref<1x32xf32, #tpu.memory_space<any>>
    %c0_i32_3 = arith.constant 0 : i32
    %c0_i32_4 = arith.constant 0 : i32
    %8 = tpu.memref_slice %arg8[%c0_i32_3, %c0_i32_4] : memref<8x32xf32, #tpu.memory_space<vmem>> -> memref<1x32xf32, #tpu.memory_space<vmem>>
    %9 = tpu.memref_slice %arg9[%c0_i32_1] : memref<1x!tpu.dma_semaphore, #tpu.memory_space<semaphore_mem>> -> memref<1x!tpu.dma_semaphore, #tpu.memory_space<semaphore_mem>>
    %10 = tpu.memref_squeeze %9 : memref<1x!tpu.dma_semaphore, #tpu.memory_space<semaphore_mem>> -> memref<!tpu.dma_semaphore, #tpu.memory_space<semaphore_mem>>
    tpu.enqueue_dma source(%7 : memref<1x32xf32, #tpu.memory_space<any>>) target(%8 : memref<1x32xf32, #tpu.memory_space<vmem>>) target_semaphore(%10 : memref<!tpu.dma_semaphore, #tpu.memory_space<semaphore_mem>>)
    %c8_i32_5 = arith.constant 8 : i32
    %11 = arith.muli %arg1, %c8_i32_5 : i32
    %c1_i32 = arith.constant 1 : i32
    %12 = arith.addi %11, %c1_i32 : i32
    %13 = arith.index_cast %arg0 : i32 to index
    %14 = arith.index_cast %12 : i32 to index
    %15 = memref.load %arg2[%13, %14] : memref<2x8xi32, #tpu.memory_space<smem>>
    %c0_i32_6 = arith.constant 0 : i32
    %c49_i32_7 = arith.constant 49 : i32
    %16 = arith.maxsi %c0_i32_6, %15 : i32
    %17 = arith.minsi %c49_i32_7, %16 : i32
    %c0_i32_8 = arith.constant 0 : i32
    %c0_i32_9 = arith.constant 0 : i32
    %18 = tpu.memref_slice %arg3[%17, %c0_i32_9] : memref<50x32xf32, #tpu.memory_space<any>> -> memref<1x32xf32, #tpu.memory_space<any>>
    %c1_i32_10 = arith.constant 1 : i32
    %c0_i32_11 = arith.constant 0 : i32
    %19 = tpu.memref_slice %arg8[%c1_i32_10, %c0_i32_11] : memref<8x32xf32, #tpu.memory_space<vmem>> -> memref<1x32xf32, #tpu.memory_space<vmem>>
    %20 = tpu.memref_slice %arg9[%c0_i32_8] : memref<1x!tpu.dma_semaphore, #tpu.memory_space<semaphore_mem>> -> memref<1x!tpu.dma_semaphore, #tpu.memory_space<semaphore_mem>>
    %21 = tpu.memref_squeeze %20 : memref<1x!tpu.dma_semaphore, #tpu.memory_space<semaphore_mem>> -> memref<!tpu.dma_semaphore, #tpu.memory_space<semaphore_mem>>
    tpu.enqueue_dma source(%18 : memref<1x32xf32, #tpu.memory_space<any>>) target(%19 : memref<1x32xf32, #tpu.memory_space<vmem>>) target_semaphore(%21 : memref<!tpu.dma_semaphore, #tpu.memory_space<semaphore_mem>>)
    %c8_i32_12 = arith.constant 8 : i32
    %22 = arith.muli %arg1, %c8_i32_12 : i32
    %c2_i32 = arith.constant 2 : i32
    %23 = arith.addi %22, %c2_i32 : i32
    %24 = arith.index_cast %arg0 : i32 to index
    %25 = arith.index_cast %23 : i32 to index
    %26 = memref.load %arg2[%24, %25] : memref<2x8xi32, #tpu.memory_space<smem>>
    %c0_i32_13 = arith.constant 0 : i32
    %c49_i32_14 = arith.constant 49 : i32
    %27 = arith.maxsi %c0_i32_13, %26 : i32
    %28 = arith.minsi %c49_i32_14, %27 : i32
    %c0_i32_15 = arith.constant 0 : i32
    %c0_i32_16 = arith.constant 0 : i32
    %29 = tpu.memref_slice %arg3[%28, %c0_i32_16] : memref<50x32xf32, #tpu.memory_space<any>> -> memref<1x32xf32, #tpu.memory_space<any>>
    %c2_i32_17 = arith.constant 2 : i32
    %c0_i32_18 = arith.constant 0 : i32
    %30 = tpu.memref_slice %arg8[%c2_i32_17, %c0_i32_18] : memref<8x32xf32, #tpu.memory_space<vmem>> -> memref<1x32xf32, #tpu.memory_space<vmem>>
    %31 = tpu.memref_slice %arg9[%c0_i32_15] : memref<1x!tpu.dma_semaphore, #tpu.memory_space<semaphore_mem>> -> memref<1x!tpu.dma_semaphore, #tpu.memory_space<semaphore_mem>>
    %32 = tpu.memref_squeeze %31 : memref<1x!tpu.dma_semaphore, #tpu.memory_space<semaphore_mem>> -> memref<!tpu.dma_semaphore, #tpu.memory_space<semaphore_mem>>
    tpu.enqueue_dma source(%29 : memref<1x32xf32, #tpu.memory_space<any>>) target(%30 : memref<1x32xf32, #tpu.memory_space<vmem>>) target_semaphore(%32 : memref<!tpu.dma_semaphore, #tpu.memory_space<semaphore_mem>>)
    %c8_i32_19 = arith.constant 8 : i32
    %33 = arith.muli %arg1, %c8_i32_19 : i32
    %c3_i32 = arith.constant 3 : i32
    %34 = arith.addi %33, %c3_i32 : i32
    %35 = arith.index_cast %arg0 : i32 to index
    %36 = arith.index_cast %34 : i32 to index
    %37 = memref.load %arg2[%35, %36] : memref<2x8xi32, #tpu.memory_space<smem>>
    %c0_i32_20 = arith.constant 0 : i32
    %c49_i32_21 = arith.constant 49 : i32
    %38 = arith.maxsi %c0_i32_20, %37 : i32
    %39 = arith.minsi %c49_i32_21, %38 : i32
    %c0_i32_22 = arith.constant 0 : i32
    %c0_i32_23 = arith.constant 0 : i32
    %40 = tpu.memref_slice %arg3[%39, %c0_i32_23] : memref<50x32xf32, #tpu.memory_space<any>> -> memref<1x32xf32, #tpu.memory_space<any>>
    %c3_i32_24 = arith.constant 3 : i32
    %c0_i32_25 = arith.constant 0 : i32
    %41 = tpu.memref_slice %arg8[%c3_i32_24, %c0_i32_25] : memref<8x32xf32, #tpu.memory_space<vmem>> -> memref<1x32xf32, #tpu.memory_space<vmem>>
    %42 = tpu.memref_slice %arg9[%c0_i32_22] : memref<1x!tpu.dma_semaphore, #tpu.memory_space<semaphore_mem>> -> memref<1x!tpu.dma_semaphore, #tpu.memory_space<semaphore_mem>>
    %43 = tpu.memref_squeeze %42 : memref<1x!tpu.dma_semaphore, #tpu.memory_space<semaphore_mem>> -> memref<!tpu.dma_semaphore, #tpu.memory_space<semaphore_mem>>
    tpu.enqueue_dma source(%40 : memref<1x32xf32, #tpu.memory_space<any>>) target(%41 : memref<1x32xf32, #tpu.memory_space<vmem>>) target_semaphore(%43 : memref<!tpu.dma_semaphore, #tpu.memory_space<semaphore_mem>>)
    %c8_i32_26 = arith.constant 8 : i32
    %44 = arith.muli %arg1, %c8_i32_26 : i32
    %c4_i32 = arith.constant 4 : i32
    %45 = arith.addi %44, %c4_i32 : i32
    %46 = arith.index_cast %arg0 : i32 to index
    %47 = arith.index_cast %45 : i32 to index
    %48 = memref.load %arg2[%46, %47] : memref<2x8xi32, #tpu.memory_space<smem>>
    %c0_i32_27 = arith.constant 0 : i32
    %c49_i32_28 = arith.constant 49 : i32
    %49 = arith.maxsi %c0_i32_27, %48 : i32
    %50 = arith.minsi %c49_i32_28, %49 : i32
    %c0_i32_29 = arith.constant 0 : i32
    %c0_i32_30 = arith.constant 0 : i32
    %51 = tpu.memref_slice %arg3[%50, %c0_i32_30] : memref<50x32xf32, #tpu.memory_space<any>> -> memref<1x32xf32, #tpu.memory_space<any>>
    %c4_i32_31 = arith.constant 4 : i32
    %c0_i32_32 = arith.constant 0 : i32
    %52 = tpu.memref_slice %arg8[%c4_i32_31, %c0_i32_32] : memref<8x32xf32, #tpu.memory_space<vmem>> -> memref<1x32xf32, #tpu.memory_space<vmem>>
    %53 = tpu.memref_slice %arg9[%c0_i32_29] : memref<1x!tpu.dma_semaphore, #tpu.memory_space<semaphore_mem>> -> memref<1x!tpu.dma_semaphore, #tpu.memory_space<semaphore_mem>>
    %54 = tpu.memref_squeeze %53 : memref<1x!tpu.dma_semaphore, #tpu.memory_space<semaphore_mem>> -> memref<!tpu.dma_semaphore, #tpu.memory_space<semaphore_mem>>
    tpu.enqueue_dma source(%51 : memref<1x32xf32, #tpu.memory_space<any>>) target(%52 : memref<1x32xf32, #tpu.memory_space<vmem>>) target_semaphore(%54 : memref<!tpu.dma_semaphore, #tpu.memory_space<semaphore_mem>>)
    %c8_i32_33 = arith.constant 8 : i32
    %55 = arith.muli %arg1, %c8_i32_33 : i32
    %c5_i32 = arith.constant 5 : i32
    %56 = arith.addi %55, %c5_i32 : i32
    %57 = arith.index_cast %arg0 : i32 to index
    %58 = arith.index_cast %56 : i32 to index
    %59 = memref.load %arg2[%57, %58] : memref<2x8xi32, #tpu.memory_space<smem>>
    %c0_i32_34 = arith.constant 0 : i32
    %c49_i32_35 = arith.constant 49 : i32
    %60 = arith.maxsi %c0_i32_34, %59 : i32
    %61 = arith.minsi %c49_i32_35, %60 : i32
    %c0_i32_36 = arith.constant 0 : i32
    %c0_i32_37 = arith.constant 0 : i32
    %62 = tpu.memref_slice %arg3[%61, %c0_i32_37] : memref<50x32xf32, #tpu.memory_space<any>> -> memref<1x32xf32, #tpu.memory_space<any>>
    %c5_i32_38 = arith.constant 5 : i32
    %c0_i32_39 = arith.constant 0 : i32
    %63 = tpu.memref_slice %arg8[%c5_i32_38, %c0_i32_39] : memref<8x32xf32, #tpu.memory_space<vmem>> -> memref<1x32xf32, #tpu.memory_space<vmem>>
    %64 = tpu.memref_slice %arg9[%c0_i32_36] : memref<1x!tpu.dma_semaphore, #tpu.memory_space<semaphore_mem>> -> memref<1x!tpu.dma_semaphore, #tpu.memory_space<semaphore_mem>>
    %65 = tpu.memref_squeeze %64 : memref<1x!tpu.dma_semaphore, #tpu.memory_space<semaphore_mem>> -> memref<!tpu.dma_semaphore, #tpu.memory_space<semaphore_mem>>
    tpu.enqueue_dma source(%62 : memref<1x32xf32, #tpu.memory_space<any>>) target(%63 : memref<1x32xf32, #tpu.memory_space<vmem>>) target_semaphore(%65 : memref<!tpu.dma_semaphore, #tpu.memory_space<semaphore_mem>>)
    %c8_i32_40 = arith.constant 8 : i32
    %66 = arith.muli %arg1, %c8_i32_40 : i32
    %c6_i32 = arith.constant 6 : i32
    %67 = arith.addi %66, %c6_i32 : i32
    %68 = arith.index_cast %arg0 : i32 to index
    %69 = arith.index_cast %67 : i32 to index
    %70 = memref.load %arg2[%68, %69] : memref<2x8xi32, #tpu.memory_space<smem>>
    %c0_i32_41 = arith.constant 0 : i32
    %c49_i32_42 = arith.constant 49 : i32
    %71 = arith.maxsi %c0_i32_41, %70 : i32
    %72 = arith.minsi %c49_i32_42, %71 : i32
    %c0_i32_43 = arith.constant 0 : i32
    %c0_i32_44 = arith.constant 0 : i32
    %73 = tpu.memref_slice %arg3[%72, %c0_i32_44] : memref<50x32xf32, #tpu.memory_space<any>> -> memref<1x32xf32, #tpu.memory_space<any>>
    %c6_i32_45 = arith.constant 6 : i32
    %c0_i32_46 = arith.constant 0 : i32
    %74 = tpu.memref_slice %arg8[%c6_i32_45, %c0_i32_46] : memref<8x32xf32, #tpu.memory_space<vmem>> -> memref<1x32xf32, #tpu.memory_space<vmem>>
    %75 = tpu.memref_slice %arg9[%c0_i32_43] : memref<1x!tpu.dma_semaphore, #tpu.memory_space<semaphore_mem>> -> memref<1x!tpu.dma_semaphore, #tpu.memory_space<semaphore_mem>>
    %76 = tpu.memref_squeeze %75 : memref<1x!tpu.dma_semaphore, #tpu.memory_space<semaphore_mem>> -> memref<!tpu.dma_semaphore, #tpu.memory_space<semaphore_mem>>
    tpu.enqueue_dma source(%73 : memref<1x32xf32, #tpu.memory_space<any>>) target(%74 : memref<1x32xf32, #tpu.memory_space<vmem>>) target_semaphore(%76 : memref<!tpu.dma_semaphore, #tpu.memory_space<semaphore_mem>>)
    %c8_i32_47 = arith.constant 8 : i32
    %77 = arith.muli %arg1, %c8_i32_47 : i32
    %c7_i32 = arith.constant 7 : i32
    %78 = arith.addi %77, %c7_i32 : i32
    %79 = arith.index_cast %arg0 : i32 to index
    %80 = arith.index_cast %78 : i32 to index
    %81 = memref.load %arg2[%79, %80] : memref<2x8xi32, #tpu.memory_space<smem>>
    %c0_i32_48 = arith.constant 0 : i32
    %c49_i32_49 = arith.constant 49 : i32
    %82 = arith.maxsi %c0_i32_48, %81 : i32
    %83 = arith.minsi %c49_i32_49, %82 : i32
    %c0_i32_50 = arith.constant 0 : i32
    %c0_i32_51 = arith.constant 0 : i32
    %84 = tpu.memref_slice %arg3[%83, %c0_i32_51] : memref<50x32xf32, #tpu.memory_space<any>> -> memref<1x32xf32, #tpu.memory_space<any>>
    %c7_i32_52 = arith.constant 7 : i32
    %c0_i32_53 = arith.constant 0 : i32
    %85 = tpu.memref_slice %arg8[%c7_i32_52, %c0_i32_53] : memref<8x32xf32, #tpu.memory_space<vmem>> -> memref<1x32xf32, #tpu.memory_space<vmem>>
    %86 = tpu.memref_slice %arg9[%c0_i32_50] : memref<1x!tpu.dma_semaphore, #tpu.memory_space<semaphore_mem>> -> memref<1x!tpu.dma_semaphore, #tpu.memory_space<semaphore_mem>>
    %87 = tpu.memref_squeeze %86 : memref<1x!tpu.dma_semaphore, #tpu.memory_space<semaphore_mem>> -> memref<!tpu.dma_semaphore, #tpu.memory_space<semaphore_mem>>
    tpu.enqueue_dma source(%84 : memref<1x32xf32, #tpu.memory_space<any>>) target(%85 : memref<1x32xf32, #tpu.memory_space<vmem>>) target_semaphore(%87 : memref<!tpu.dma_semaphore, #tpu.memory_space<semaphore_mem>>)
    %c0_i32_54 = arith.constant 0 : i32
    %c0_i32_55 = arith.constant 0 : i32
    %88 = tpu.memref_slice %arg3[%6, %c0_i32_55] : memref<50x32xf32, #tpu.memory_space<any>> -> memref<1x32xf32, #tpu.memory_space<any>>
    %c0_i32_56 = arith.constant 0 : i32
    %c0_i32_57 = arith.constant 0 : i32
    %89 = tpu.memref_slice %arg8[%c0_i32_56, %c0_i32_57] : memref<8x32xf32, #tpu.memory_space<vmem>> -> memref<1x32xf32, #tpu.memory_space<vmem>>
    %90 = tpu.memref_slice %arg9[%c0_i32_54] : memref<1x!tpu.dma_semaphore, #tpu.memory_space<semaphore_mem>> -> memref<1x!tpu.dma_semaphore, #tpu.memory_space<semaphore_mem>>
    %91 = tpu.memref_squeeze %90 : memref<1x!tpu.dma_semaphore, #tpu.memory_space<semaphore_mem>> -> memref<!tpu.dma_semaphore, #tpu.memory_space<semaphore_mem>>
    tpu.wait_dma2 semaphore(%91 : memref<!tpu.dma_semaphore, #tpu.memory_space<semaphore_mem>>) src(%88 : memref<1x32xf32, #tpu.memory_space<any>>) dst(%89 : memref<1x32xf32, #tpu.memory_space<vmem>>)
    %c0_i32_58 = arith.constant 0 : i32
    %c0_i32_59 = arith.constant 0 : i32
    %92 = tpu.memref_slice %arg3[%17, %c0_i32_59] : memref<50x32xf32, #tpu.memory_space<any>> -> memref<1x32xf32, #tpu.memory_space<any>>
    %c1_i32_60 = arith.constant 1 : i32
    %c0_i32_61 = arith.constant 0 : i32
    %93 = tpu.memref_slice %arg8[%c1_i32_60, %c0_i32_61] : memref<8x32xf32, #tpu.memory_space<vmem>> -> memref<1x32xf32, #tpu.memory_space<vmem>>
    %94 = tpu.memref_slice %arg9[%c0_i32_58] : memref<1x!tpu.dma_semaphore, #tpu.memory_space<semaphore_mem>> -> memref<1x!tpu.dma_semaphore, #tpu.memory_space<semaphore_mem>>
    %95 = tpu.memref_squeeze %94 : memref<1x!tpu.dma_semaphore, #tpu.memory_space<semaphore_mem>> -> memref<!tpu.dma_semaphore, #tpu.memory_space<semaphore_mem>>
    tpu.wait_dma2 semaphore(%95 : memref<!tpu.dma_semaphore, #tpu.memory_space<semaphore_mem>>) src(%92 : memref<1x32xf32, #tpu.memory_space<any>>) dst(%93 : memref<1x32xf32, #tpu.memory_space<vmem>>)
    %c0_i32_62 = arith.constant 0 : i32
    %c0_i32_63 = arith.constant 0 : i32
    %96 = tpu.memref_slice %arg3[%28, %c0_i32_63] : memref<50x32xf32, #tpu.memory_space<any>> -> memref<1x32xf32, #tpu.memory_space<any>>
    %c2_i32_64 = arith.constant 2 : i32
    %c0_i32_65 = arith.constant 0 : i32
    %97 = tpu.memref_slice %arg8[%c2_i32_64, %c0_i32_65] : memref<8x32xf32, #tpu.memory_space<vmem>> -> memref<1x32xf32, #tpu.memory_space<vmem>>
    %98 = tpu.memref_slice %arg9[%c0_i32_62] : memref<1x!tpu.dma_semaphore, #tpu.memory_space<semaphore_mem>> -> memref<1x!tpu.dma_semaphore, #tpu.memory_space<semaphore_mem>>
    %99 = tpu.memref_squeeze %98 : memref<1x!tpu.dma_semaphore, #tpu.memory_space<semaphore_mem>> -> memref<!tpu.dma_semaphore, #tpu.memory_space<semaphore_mem>>
    tpu.wait_dma2 semaphore(%99 : memref<!tpu.dma_semaphore, #tpu.memory_space<semaphore_mem>>) src(%96 : memref<1x32xf32, #tpu.memory_space<any>>) dst(%97 : memref<1x32xf32, #tpu.memory_space<vmem>>)
    %c0_i32_66 = arith.constant 0 : i32
    %c0_i32_67 = arith.constant 0 : i32
    %100 = tpu.memref_slice %arg3[%39, %c0_i32_67] : memref<50x32xf32, #tpu.memory_space<any>> -> memref<1x32xf32, #tpu.memory_space<any>>
    %c3_i32_68 = arith.constant 3 : i32
    %c0_i32_69 = arith.constant 0 : i32
    %101 = tpu.memref_slice %arg8[%c3_i32_68, %c0_i32_69] : memref<8x32xf32, #tpu.memory_space<vmem>> -> memref<1x32xf32, #tpu.memory_space<vmem>>
    %102 = tpu.memref_slice %arg9[%c0_i32_66] : memref<1x!tpu.dma_semaphore, #tpu.memory_space<semaphore_mem>> -> memref<1x!tpu.dma_semaphore, #tpu.memory_space<semaphore_mem>>
    %103 = tpu.memref_squeeze %102 : memref<1x!tpu.dma_semaphore, #tpu.memory_space<semaphore_mem>> -> memref<!tpu.dma_semaphore, #tpu.memory_space<semaphore_mem>>
    tpu.wait_dma2 semaphore(%103 : memref<!tpu.dma_semaphore, #tpu.memory_space<semaphore_mem>>) src(%100 : memref<1x32xf32, #tpu.memory_space<any>>) dst(%101 : memref<1x32xf32, #tpu.memory_space<vmem>>)
    %c0_i32_70 = arith.constant 0 : i32
    %c0_i32_71 = arith.constant 0 : i32
    %104 = tpu.memref_slice %arg3[%50, %c0_i32_71] : memref<50x32xf32, #tpu.memory_space<any>> -> memref<1x32xf32, #tpu.memory_space<any>>
    %c4_i32_72 = arith.constant 4 : i32
    %c0_i32_73 = arith.constant 0 : i32
    %105 = tpu.memref_slice %arg8[%c4_i32_72, %c0_i32_73] : memref<8x32xf32, #tpu.memory_space<vmem>> -> memref<1x32xf32, #tpu.memory_space<vmem>>
    %106 = tpu.memref_slice %arg9[%c0_i32_70] : memref<1x!tpu.dma_semaphore, #tpu.memory_space<semaphore_mem>> -> memref<1x!tpu.dma_semaphore, #tpu.memory_space<semaphore_mem>>
    %107 = tpu.memref_squeeze %106 : memref<1x!tpu.dma_semaphore, #tpu.memory_space<semaphore_mem>> -> memref<!tpu.dma_semaphore, #tpu.memory_space<semaphore_mem>>
    tpu.wait_dma2 semaphore(%107 : memref<!tpu.dma_semaphore, #tpu.memory_space<semaphore_mem>>) src(%104 : memref<1x32xf32, #tpu.memory_space<any>>) dst(%105 : memref<1x32xf32, #tpu.memory_space<vmem>>)
    %c0_i32_74 = arith.constant 0 : i32
    %c0_i32_75 = arith.constant 0 : i32
    %108 = tpu.memref_slice %arg3[%61, %c0_i32_75] : memref<50x32xf32, #tpu.memory_space<any>> -> memref<1x32xf32, #tpu.memory_space<any>>
    %c5_i32_76 = arith.constant 5 : i32
    %c0_i32_77 = arith.constant 0 : i32
    %109 = tpu.memref_slice %arg8[%c5_i32_76, %c0_i32_77] : memref<8x32xf32, #tpu.memory_space<vmem>> -> memref<1x32xf32, #tpu.memory_space<vmem>>
    %110 = tpu.memref_slice %arg9[%c0_i32_74] : memref<1x!tpu.dma_semaphore, #tpu.memory_space<semaphore_mem>> -> memref<1x!tpu.dma_semaphore, #tpu.memory_space<semaphore_mem>>
    %111 = tpu.memref_squeeze %110 : memref<1x!tpu.dma_semaphore, #tpu.memory_space<semaphore_mem>> -> memref<!tpu.dma_semaphore, #tpu.memory_space<semaphore_mem>>
    tpu.wait_dma2 semaphore(%111 : memref<!tpu.dma_semaphore, #tpu.memory_space<semaphore_mem>>) src(%108 : memref<1x32xf32, #tpu.memory_space<any>>) dst(%109 : memref<1x32xf32, #tpu.memory_space<vmem>>)
    %c0_i32_78 = arith.constant 0 : i32
    %c0_i32_79 = arith.constant 0 : i32
    %112 = tpu.memref_slice %arg3[%72, %c0_i32_79] : memref<50x32xf32, #tpu.memory_space<any>> -> memref<1x32xf32, #tpu.memory_space<any>>
    %c6_i32_80 = arith.constant 6 : i32
    %c0_i32_81 = arith.constant 0 : i32
    %113 = tpu.memref_slice %arg8[%c6_i32_80, %c0_i32_81] : memref<8x32xf32, #tpu.memory_space<vmem>> -> memref<1x32xf32, #tpu.memory_space<vmem>>
    %114 = tpu.memref_slice %arg9[%c0_i32_78] : memref<1x!tpu.dma_semaphore, #tpu.memory_space<semaphore_mem>> -> memref<1x!tpu.dma_semaphore, #tpu.memory_space<semaphore_mem>>
    %115 = tpu.memref_squeeze %114 : memref<1x!tpu.dma_semaphore, #tpu.memory_space<semaphore_mem>> -> memref<!tpu.dma_semaphore, #tpu.memory_space<semaphore_mem>>
    tpu.wait_dma2 semaphore(%115 : memref<!tpu.dma_semaphore, #tpu.memory_space<semaphore_mem>>) src(%112 : memref<1x32xf32, #tpu.memory_space<any>>) dst(%113 : memref<1x32xf32, #tpu.memory_space<vmem>>)
    %c0_i32_82 = arith.constant 0 : i32
    %c0_i32_83 = arith.constant 0 : i32
    %116 = tpu.memref_slice %arg3[%83, %c0_i32_83] : memref<50x32xf32, #tpu.memory_space<any>> -> memref<1x32xf32, #tpu.memory_space<any>>
    %c7_i32_84 = arith.constant 7 : i32
    %c0_i32_85 = arith.constant 0 : i32
    %117 = tpu.memref_slice %arg8[%c7_i32_84, %c0_i32_85] : memref<8x32xf32, #tpu.memory_space<vmem>> -> memref<1x32xf32, #tpu.memory_space<vmem>>
    %118 = tpu.memref_slice %arg9[%c0_i32_82] : memref<1x!tpu.dma_semaphore, #tpu.memory_space<semaphore_mem>> -> memref<1x!tpu.dma_semaphore, #tpu.memory_space<semaphore_mem>>
    %119 = tpu.memref_squeeze %118 : memref<1x!tpu.dma_semaphore, #tpu.memory_space<semaphore_mem>> -> memref<!tpu.dma_semaphore, #tpu.memory_space<semaphore_mem>>
    tpu.wait_dma2 semaphore(%119 : memref<!tpu.dma_semaphore, #tpu.memory_space<semaphore_mem>>) src(%116 : memref<1x32xf32, #tpu.memory_space<any>>) dst(%117 : memref<1x32xf32, #tpu.memory_space<vmem>>)
    %c0 = arith.constant 0 : index
    %c0_86 = arith.constant 0 : index
    %120 = vector.load %arg8[%c0, %c0_86] : memref<8x32xf32, #tpu.memory_space<vmem>>, vector<8x32xf32>
    %c0_87 = arith.constant 0 : index
    %c0_88 = arith.constant 0 : index
    %121 = vector.load %arg4[%c0_87, %c0_88] : memref<8x32xf32, #tpu.memory_space<vmem>>, vector<8x32xf32>
    %122 = arith.addf %120, %121 : vector<8x32xf32>
    %cst = arith.constant dense<0.000000e+00> : vector<8xf32>
    %123 = vector.multi_reduction <add>, %122, %cst [1] : vector<8x32xf32> to vector<8xf32>
    %124 = vector.shape_cast %123 : vector<8xf32> to vector<8x1xf32>
    %cst_89 = arith.constant 3.200000e+01 : f32
    %125 = vector.broadcast %cst_89 : f32 to vector<8x1xf32>
    %126 = arith.divf %124, %125 : vector<8x1xf32>
    %127 = arith.mulf %122, %122 : vector<8x32xf32>
    %cst_90 = arith.constant dense<0.000000e+00> : vector<8xf32>
    %128 = vector.multi_reduction <add>, %127, %cst_90 [1] : vector<8x32xf32> to vector<8xf32>
    %129 = vector.shape_cast %128 : vector<8xf32> to vector<8x1xf32>
    %cst_91 = arith.constant 3.200000e+01 : f32
    %130 = vector.broadcast %cst_91 : f32 to vector<8x1xf32>
    %131 = arith.divf %129, %130 : vector<8x1xf32>
    %132 = arith.mulf %126, %126 : vector<8x1xf32>
    %133 = arith.subf %131, %132 : vector<8x1xf32>
    %134 = vector.broadcast %126 : vector<8x1xf32> to vector<8x32xf32>
    %135 = arith.subf %122, %134 : vector<8x32xf32>
    %cst_92 = arith.constant 9.99999996E-13 : f32
    %136 = vector.broadcast %cst_92 : f32 to vector<8x1xf32>
    %137 = arith.addf %133, %136 : vector<8x1xf32>
    %138 = math.rsqrt %137 : vector<8x1xf32>
    %139 = vector.broadcast %138 : vector<8x1xf32> to vector<8x32xf32>
    %140 = arith.mulf %135, %139 : vector<8x32xf32>
    %c0_93 = arith.constant 0 : index
    %c0_94 = arith.constant 0 : index
    %141 = vector.load %arg5[%c0_93, %c0_94] : memref<1x32xf32, #tpu.memory_space<vmem>>, vector<1x32xf32>
    %142 = vector.broadcast %141 : vector<1x32xf32> to vector<8x32xf32>
    %143 = arith.mulf %142, %140 : vector<8x32xf32>
    %c0_95 = arith.constant 0 : index
    %c0_96 = arith.constant 0 : index
    %144 = vector.load %arg6[%c0_95, %c0_96] : memref<1x32xf32, #tpu.memory_space<vmem>>, vector<1x32xf32>
    %145 = vector.broadcast %144 : vector<1x32xf32> to vector<8x32xf32>
    %146 = arith.addf %143, %145 : vector<8x32xf32>
    %c0_97 = arith.constant 0 : index
    %c0_98 = arith.constant 0 : index
    %c0_99 = arith.constant 0 : index
    %147 = vector.load %arg7[%c0_97, %c0_98, %c0_99] : memref<1x8x32xf32, #tpu.memory_space<vmem>>, vector<1x8x32xf32>
    %148 = vector.shape_cast %147 : vector<1x8x32xf32> to vector<8x32xf32>
    %149 = vector.shape_cast %146 : vector<8x32xf32> to vector<1x8x32xf32>
    tpu.vector_store %arg7[%c0_97, %c0_98, %c0_99], %149 {strides = array<i32>} : memref<1x8x32xf32, #tpu.memory_space<vmem>>, vector<1x8x32xf32>,
    return
  }
  func.func @transform_1(%arg0: i32, %arg1: i32, %arg2: memref<2x8xi32, #tpu.memory_space<smem>>) -> (i32, i32) {
    %c0_i32 = arith.constant 0 : i32
    %c0_i32_0 = arith.constant 0 : i32
    return %arg1, %c0_i32 : i32, i32
  }
  func.func @transform_2(%arg0: i32, %arg1: i32, %arg2: memref<2x8xi32, #tpu.memory_space<smem>>) -> (i32, i32) {
    %c0_i32 = arith.constant 0 : i32
    %c0_i32_0 = arith.constant 0 : i32
    %c0_i32_1 = arith.constant 0 : i32
    return %c0_i32, %c0_i32_0 : i32, i32
  }
  func.func @transform_3(%arg0: i32, %arg1: i32, %arg2: memref<2x8xi32, #tpu.memory_space<smem>>) -> (i32, i32) {
    %c0_i32 = arith.constant 0 : i32
    %c0_i32_0 = arith.constant 0 : i32
    %c0_i32_1 = arith.constant 0 : i32
    return %c0_i32, %c0_i32_0 : i32, i32
  }
  func.func @transform_4(%arg0: i32, %arg1: i32, %arg2: memref<2x8xi32, #tpu.memory_space<smem>>) -> (i32, i32, i32) {
    %c0_i32 = arith.constant 0 : i32
    %c0_i32_0 = arith.constant 0 : i32
    return %arg0, %arg1, %c0_i32 : i32, i32, i32
  }
}

</mosaic_0001>

<llo_original>
// kernel: tpu_custom_call.1
$region0: #{tpu_custom_call.1}
  #allocation0 [shape = 'u32[]', space=smem, size = 0x4, offset = 0x4, fixed_abs, tag = 'smem constant byte address 0x4 - core index']
  #allocation1 [shape = 'u32[144,128]{1,0:T(1,128)}', space=vmem, size = 0x12000, scoped, tag = 'internal scratch']
  #allocation2 [shape = 'f32[8,32]{1,0:T(8,128)}', space=vmem, size = 0x1000, scoped, tag = 'scratch operand']
  #allocation3 [shape = 's32[1]{0}', space=sflag, size = 0x4, scoped, tag = 'scratch operand']
  #allocation4 [shape = 's32[1]{0}', space=sflag, size = 0x4, scoped, tag = 'scoped memory for tpu_custom_call.1']
  #allocation5 [shape = 'u8[1024]{0}', space=smem, size = 0x400, scoped, tag = 'prefetched SMEM operand 0']
  #allocation8 [shape = 's32[]', space=sflag, size = 0x4, offset = 0, fixed_abs, tag = 'sflag constant byte address 0x0 - dummy sync flag']
  #allocation9 [shape = 's32[]', space=sflag, size = 0x4, offset = 0, fixed_abs, tag = 'sflag constant byte address 0x0 - dummy sync flag']
  #allocation10 [shape = 's32[]', space=sflag, size = 0x4, offset = 0, fixed_abs, tag = 'sflag constant byte address 0x0 - dummy sync flag']
  #allocation11 [shape = 's32[]', space=sflag, size = 0x4, offset = 0, fixed_abs, tag = 'sflag constant byte address 0x0 - dummy sync flag']
  #allocation12 [shape = 's32[]', space=sflag, size = 0x4, offset = 0, fixed_abs, tag = 'sflag constant byte address 0x0 - dummy sync flag']
  #allocation13 [shape = 's32[]', space=sflag, size = 0x4, offset = 0, fixed_abs, tag = 'sflag constant byte address 0x0 - dummy sync flag']
  #allocation14 [shape = 's32[]', space=sflag, size = 0x4, offset = 0, fixed_abs, tag = 'sflag constant byte address 0x0 - dummy sync flag']
  #allocation15 [shape = 's32[]', space=sflag, size = 0x4, offset = 0, fixed_abs, tag = 'sflag constant byte address 0x0 - dummy sync flag']
  %s0 = inlined_call_operand.vmem [shape: s32[2,8], index: 0, kind: input, shape index: {}]
  %s1 = inlined_call_operand.vmem [shape: f32[50,32], index: 1, kind: input, shape index: {}]
  %s2 = inlined_call_operand.vmem [shape: f32[8,32], index: 2, kind: input, shape index: {}]
  %s3 = inlined_call_operand.vmem [shape: f32[1,32], index: 3, kind: input, shape index: {}]
  %s4 = inlined_call_operand.vmem [shape: f32[1,32], index: 4, kind: input, shape index: {}]
  %s5 = inlined_call_operand.hbm [shape: f32[2,8,32], index: 5, kind: output, shape index: {}]
  %s6 = sld [smem:[#allocation0]]
  $region285: #{tpu_custom_call.1} parent=0
    _
  %s8 = ssub.s32 1, %s6
  %s9 = scalar_select 0, %s8, %s6
  %s10 = sshll.u32 %s0, 4
  %s11 = int_to_ptr.vmem [resolvable:$true] %s10
  %13 = dma.vmem_to_smem %s11, 32, [#allocation5], [#allocation4]
  %14 = dma.done [#allocation4], 32
  %15 = sfence
  $region1: #{tpu_custom_call.1} parent=0
    #allocation6 [shape = 'u8[8192]{0}', space=vmem, size = 0x2000, scoped, tag = 'output window, operand 0']
    #allocation7 [shape = 's32[2]{0}', space=sflag, size = 0x8, scoped, tag = 'scoped memory for tpu_custom_call.1']
    %16 = vsyncpa [#allocation7], 0
    %s17 = scalar_lea.sflag [#allocation7], 1
    %18 = vsyncpa %s17, 0
    loop: start=0, step=1, limit=4
    $region2: #{tpu_custom_call.1} parent=1 // loop_pre_header
      _
    $region3: #{tpu_custom_call.1} parent=1 // loop_header
      %s20 = sphi 0, %s24
      %p21 = scmp.ge.s32.totalorder %s20, 4
      %s27 = sphi 0, %s39
      %s28 = sphi 0, %s35
      %s29 = sphi 0, %s27
      %s30 = sphi 0, %s28
      %s31 = sphi 0, %s29
      %s32 = sphi 0, %s30
      %s42 = sphi 0, %s44
      %s45 = sphi 0, %s42
      %s46 = sphi 0, %s45
      %s62 = sphi 0, %s46
      %s66 = sphi 0, %s66
      %s68 = sphi 0, %s66
      %s69 = sphi 0, %s68
      %s83 = sphi 0, %s69
      %s87 = sphi 0, %s87
      %s89 = sphi 0, %s87
      %s90 = sphi 0, %s89
      %s104 = sphi 0, %s90
      %s112 = sphi 0, %s114
      %s115 = sphi 0, %s112
      %s116 = sphi 0, %s115
      %s132 = sphi 0, %s116
    $region4: #{tpu_custom_call.1} parent=1 // loop_header_branch
      %23 = sbr.rel (%p21) target = $region8
    $region5: #{tpu_custom_call.1} parent=1 // loop_body
      %s25 = ssub.s32 %s20, 1
      %s26 = ssub.s32 %s20, 2
      %s33 = sadd.s32 1, %s28
      %p34 = scmp.ge.s32.totalorder %s33, 1
      %s35 = scalar_select %p34, 0, %s33
      %s36 = sadd.s32 1, %s27
      %s37 = scalar_select %p34, %s36, %s27
      %p38 = scmp.ge.s32.totalorder %s37, 2
      %s39 = scalar_select %p38, 0, %s37
      %s40 = ssub.s32 %s28, %s35
      %p41 = scmp.eq.s32.totalorder %s40, 0
      %s43 = sadd.s32 %s42, 1
      %s44 = scalar_select %p41, %s42, %s43
      %p47 = pneg %p41
      %p48 = scmp.eq.s32.totalorder %s20, 1
      %p49 = por %p47, %p48
      %p50 = scmp.ne.s32.totalorder %s42, %s45
      %p51 = scmp.eq.s32.totalorder %s20, 0
      %p52 = por %p50, %p51
      %p53 = scmp.ne.s32.totalorder %s42, %s45
      %p54 = scmp.eq.s32.totalorder %s25, 1
      %p55 = por %p53, %p54
      %p56 = scmp.ne.s32.totalorder %s45, %s46
      %p57 = scmp.eq.s32.totalorder %s25, 0
      %p58 = por %p56, %p57
      %p59 = scmp.ne.s32.totalorder %s45, %s46
      %p60 = scmp.eq.s32.totalorder %s26, 1
      %p61 = por %p59, %p60
      %p63 = scmp.ne.s32.totalorder %s46, %s62
      %p64 = scmp.eq.s32.totalorder %s26, 0
      %p65 = por %p63, %p64
      %s67 = sadd.s32 %s66, 1
      %p70 = scmp.eq.s32.totalorder %s20, 1
      %p71 = scmp.ne.s32.totalorder %s66, %s68
      %p72 = scmp.eq.s32.totalorder %s20, 0
      %p73 = por %p71, %p72
      %p74 = scmp.ne.s32.totalorder %s66, %s68
      %p75 = scmp.eq.s32.totalorder %s25, 1
      %p76 = por %p74, %p75
      %p77 = scmp.ne.s32.totalorder %s68, %s69
      %p78 = scmp.eq.s32.totalorder %s25, 0
      %p79 = por %p77, %p78
      %p80 = scmp.ne.s32.totalorder %s68, %s69
      %p81 = scmp.eq.s32.totalorder %s26, 1
      %p82 = por %p80, %p81
      %p84 = scmp.ne.s32.totalorder %s69, %s83
      %p85 = scmp.eq.s32.totalorder %s26, 0
      %p86 = por %p84, %p85
      %s88 = sadd.s32 %s87, 1
      %p91 = scmp.eq.s32.totalorder %s20, 1
      %p92 = scmp.ne.s32.totalorder %s87, %s89
      %p93 = scmp.eq.s32.totalorder %s20, 0
      %p94 = por %p92, %p93
      %p95 = scmp.ne.s32.totalorder %s87, %s89
      %p96 = scmp.eq.s32.totalorder %s25, 1
      %p97 = por %p95, %p96
      %p98 = scmp.ne.s32.totalorder %s89, %s90
      %p99 = scmp.eq.s32.totalorder %s25, 0
      %p100 = por %p98, %p99
      %p101 = scmp.ne.s32.totalorder %s89, %s90
      %p102 = scmp.eq.s32.totalorder %s26, 1
      %p103 = por %p101, %p102
      %p105 = scmp.ne.s32.totalorder %s90, %s104
      %p106 = scmp.eq.s32.totalorder %s26, 0
      %p107 = por %p105, %p106
      %s108 = ssub.s32 %s27, %s39
      %s109 = ssub.s32 %s28, %s35
      %s110 = sor.u32 %s108, %s109
      %p111 = scmp.eq.s32.totalorder %s110, 0
      %s113 = sadd.s32 %s112, 1
      %s114 = scalar_select %p111, %s112, %s113
      %p117 = pneg %p111
      %p118 = scmp.eq.s32.totalorder %s20, 1
      %p119 = por %p117, %p118
      %p120 = scmp.ne.s32.totalorder %s112, %s115
      %p121 = scmp.eq.s32.totalorder %s20, 0
      %p122 = por %p120, %p121
      %p123 = scmp.ne.s32.totalorder %s112, %s115
      %p124 = scmp.eq.s32.totalorder %s25, 1
      %p125 = por %p123, %p124
      %p126 = scmp.ne.s32.totalorder %s115, %s116
      %p127 = scmp.eq.s32.totalorder %s25, 0
      %p128 = por %p126, %p127
      %p129 = scmp.ne.s32.totalorder %s115, %s116
      %p130 = scmp.eq.s32.totalorder %s26, 1
      %p131 = por %p129, %p130
      %p133 = scmp.ne.s32.totalorder %s116, %s132
      %p134 = scmp.eq.s32.totalorder %s26, 0
      %p135 = por %p133, %p134
      %p136 = scmp.le.s32.totalorder 1, %s20
      %p137 = scmp.lt.s32.totalorder %s20, 3
      %p138 = pnand %p136, %p137
      %p139 = pneg %p138
      // Predicated region
      $region9: #{tpu_custom_call.1} parent=5 // pred_check
        _
      $region10: #{tpu_custom_call.1} parent=5 // pred_check_branch
        %141 = sbr.rel (%p138) target = $region12
      $region11: #{tpu_custom_call.1} parent=5 // pred_region
        %s142 = ssub.s32 %s20, 1
        // Predicated region
        $region13: #{tpu_custom_call.1} parent=11 // pred_check
          %p143 = pneg %p58
        $region14: #{tpu_custom_call.1} parent=11 // pred_check_branch
          %145 = sbr.rel (%p143) target = $region16
        $region15: #{tpu_custom_call.1} parent=11 // pred_region
          %p146 = scmp.lt.s32.totalorder %s30, 0
          %s147 = scalar_select %p146, %s30, 0
          %s148 = smul.addr %s147, 8
          %s149 = scalar_lea.vmem %s2, %s148
        $region16: #{tpu_custom_call.1} parent=11 // pred_fallthru
          _
        // Predicated region
        $region17: #{tpu_custom_call.1} parent=11 // pred_check
          %p150 = pneg %p79
        $region18: #{tpu_custom_call.1} parent=11 // pred_check_branch
          %152 = sbr.rel (%p150) target = $region20
        $region19: #{tpu_custom_call.1} parent=11 // pred_region
          _
        $region20: #{tpu_custom_call.1} parent=11 // pred_fallthru
          _
        // Predicated region
        $region21: #{tpu_custom_call.1} parent=11 // pred_check
          %p153 = pneg %p100
        $region22: #{tpu_custom_call.1} parent=11 // pred_check_branch
          %155 = sbr.rel (%p153) target = $region24
        $region23: #{tpu_custom_call.1} parent=11 // pred_region
          _
        $region24: #{tpu_custom_call.1} parent=11 // pred_fallthru
          _
      $region12: #{tpu_custom_call.1} parent=5 // pred_fallthru
        _
      %p156 = scmp.lt.s32.totalorder %s20, 2
      // Predicated region
      $region25: #{tpu_custom_call.1} parent=5 // pred_check
        %p157 = pneg %p156
      $region26: #{tpu_custom_call.1} parent=5 // pred_check_branch
        %159 = sbr.rel (%p157) target = $region28
      $region27: #{tpu_custom_call.1} parent=5 // pred_region
        _
      $region28: #{tpu_custom_call.1} parent=5 // pred_fallthru
        _
      %p160 = scmp.le.s32.totalorder 1, %s20
      %p161 = scmp.lt.s32.totalorder %s20, 3
      %p162 = pnand %p160, %p161
      %p163 = pneg %p162
      // Predicated region
      $region29: #{tpu_custom_call.1} parent=5 // pred_check
        _
      $region30: #{tpu_custom_call.1} parent=5 // pred_check_branch
        %165 = sbr.rel (%p162) target = $region32
      $region31: #{tpu_custom_call.1} parent=5 // pred_region
        %s166 = ssub.s32 %s20, 1
        %p167 = scmp.lt.s32.totalorder %s30, 0
        %s168 = scalar_select %p167, %s30, 0
        %s169 = smul.addr %s168, 8
        %s170 = scalar_lea.vmem %s2, %s169
        %p171 = pneg %p58
        %p172 = pneg %p55
        %p173 = pneg %p79
        %p174 = pneg %p76
        %p175 = pneg %p100
        %p176 = pneg %p97
        %p177 = pneg %p128
        %p178 = pneg %p125
        %s179 = sand.u32 %s115, 1
        %s180 = scalar_lea.sflag [#allocation7], %s179
        %s181 = sand.u32 %s115, 1
        %s182 = smul.addr %s181, 8
        %s183 = scalar_lea.vmem [#allocation6], %s182
        %p184 = scmp.lt.s32.totalorder %s30, 0
        %s185 = scalar_select %p184, %s30, 0
        %s186 = smul.addr %s185, 8
        %s187 = scalar_lea.vmem %s2, %s186
        %s188 = smul.u32 %s30, 8
        %s189 = sshra.s32 %s188, 7
        %s190 = sand.u32 %s188, 127
        %s191 = sadd.s32 %s189, %s29
        %s192 = smul.u32 %s191, 128
        %s193 = sshra.s32 %s188, 7
        %s194 = sand.u32 %s188, 127
        %s195 = sadd.s32 %s192, %s194
        %s196 = sld [smem:[#allocation5 + %s195]]
        %p197 = scmp.gt.s32.totalorder %s196, 0
        %s198 = scalar_select %p197, %s196, 0
        %p199 = scmp.lt.s32.totalorder %s198, 49
        %s200 = scalar_select %p199, %s198, 49
        %s201 = scalar_lea.vmem %s1, %s200
        %p203 = scmp.lt.u32.totalorder 1, 8
        %p204 = pneg %p203
        // Predicated region
        $region33: #{tpu_custom_call.1} parent=31 // pred_check
          _
        $region34: #{tpu_custom_call.1} parent=31 // pred_check_branch
          %206 = sbr.rel (%p203) target = $region36
        $region35: #{tpu_custom_call.1} parent=31 // pred_region
          %s222 = sand.u32 1, 7
          %p223 = scmp.eq.s32.totalorder %s222, 0
          %p224 = pneg %p223
          // Predicated region
          $region48: #{tpu_custom_call.1} parent=35 // pred_check
            _
          $region49: #{tpu_custom_call.1} parent=35 // pred_check_branch
            %226 = sbr.rel (%p223) target = $region51
          $region50: #{tpu_custom_call.1} parent=35 // pred_region
            %s227 = sand.u32 1, 7
            %s228 = ssub.s32 1, %s227
            %s229 = scalar_lea.vmem %s201, %s228
            %s230 = ssub.s32 1, %s227
            %s231 = scalar_lea.vmem [#allocation2], %s230
            %s232 = sshll.u32 1, %s227
            %s233 = ssub.s32 %s232, 1
            loop: start=0, step=1, limit=1
            $region52: #{tpu_custom_call.1} parent=50 // loop_pre_header
              _
            $region53: #{tpu_custom_call.1} parent=50 // loop_header
              %s235 = sphi 0, %s239
              %p236 = scmp.ge.s32.totalorder %s235, 1
              %s240 = sphi %s229, %s229
              %s241 = sphi %s231, %s231
            $region54: #{tpu_custom_call.1} parent=50 // loop_header_branch
              %238 = sbr.rel (%p236) target = $region58
            $region55: #{tpu_custom_call.1} parent=50 // loop_body
              %v242 = vld [vmem:[%s240] sm:%s233]
              %243 = vst [vmem:[%s241] sm:%s233] %v242
            $region56: #{tpu_custom_call.1} parent=50 // loop_footer
              %s239 = sadd.s32 1, %s235
            $region57: #{tpu_custom_call.1} parent=50 // loop_footer_branch
              %234 = sbr.rel target = $region53
            $region58: #{tpu_custom_call.1} parent=50 // loop_exit
              _
          $region51: #{tpu_custom_call.1} parent=35 // pred_fallthru
            _
        $region36: #{tpu_custom_call.1} parent=31 // pred_fallthru
          _
        // Predicated region
        $region37: #{tpu_custom_call.1} parent=31 // pred_check
          %p207 = pneg %p203
        $region38: #{tpu_custom_call.1} parent=31 // pred_check_branch
          %209 = sbr.rel (%p207) target = $region40
        $region39: #{tpu_custom_call.1} parent=31 // pred_region
          %s210 = sshll.u32 1, 1
          %s211 = ssub.s32 %s210, 1
          loop: start=0, step=1, limit=1
          $region41: #{tpu_custom_call.1} parent=39 // loop_pre_header
            _
          $region42: #{tpu_custom_call.1} parent=39 // loop_header
            %s213 = sphi 0, %s217
            %p214 = scmp.ge.s32.totalorder %s213, 1
            %s218 = sphi %s201, %s201
            %s219 = sphi [#allocation2], [#allocation2]
          $region43: #{tpu_custom_call.1} parent=39 // loop_header_branch
            %216 = sbr.rel (%p214) target = $region47
          $region44: #{tpu_custom_call.1} parent=39 // loop_body
            %v220 = vld [vmem:[%s218] sm:%s211]
            %221 = vst [vmem:[%s219] sm:%s211] %v220
          $region45: #{tpu_custom_call.1} parent=39 // loop_footer
            %s217 = sadd.s32 1, %s213
          $region46: #{tpu_custom_call.1} parent=39 // loop_footer_branch
            %212 = sbr.rel target = $region42
          $region47: #{tpu_custom_call.1} parent=39 // loop_exit
            _
        $region40: #{tpu_custom_call.1} parent=31 // pred_fallthru
          _
        // Predicated region
        $region59: #{tpu_custom_call.1} parent=31 // pred_check
          _
        $region60: #{tpu_custom_call.1} parent=31 // pred_check_branch
          %246 = sbr.rel (0) target = $region62
        $region61: #{tpu_custom_call.1} parent=31 // pred_region
          %247 = vsyncadd [#allocation3], 16
        $region62: #{tpu_custom_call.1} parent=31 // pred_fallthru
          _
        %s248 = sadd.s32 %s188, 1
        %s249 = sshra.s32 %s248, 7
        %s250 = sand.u32 %s248, 127
        %s251 = sadd.s32 %s249, %s29
        %s252 = smul.u32 %s251, 128
        %s253 = sshra.s32 %s248, 7
        %s254 = sand.u32 %s248, 127
        %s255 = sadd.s32 %s252, %s254
        %s256 = sld [smem:[#allocation5 + %s255]]
        %p257 = scmp.gt.s32.totalorder %s256, 0
        %s258 = scalar_select %p257, %s256, 0
        %p259 = scmp.lt.s32.totalorder %s258, 49
        %s260 = scalar_select %p259, %s258, 49
        %s261 = scalar_lea.vmem %s1, %s260
        %s262 = scalar_lea.vmem [#allocation2], 1
        %p264 = scmp.lt.u32.totalorder 1, 8
        %p265 = pneg %p264
        // Predicated region
        $region63: #{tpu_custom_call.1} parent=31 // pred_check
          _
        $region64: #{tpu_custom_call.1} parent=31 // pred_check_branch
          %267 = sbr.rel (%p264) target = $region66
        $region65: #{tpu_custom_call.1} parent=31 // pred_region
          %s283 = sand.u32 1, 7
          %p284 = scmp.eq.s32.totalorder %s283, 0
          %p285 = pneg %p284
          // Predicated region
          $region78: #{tpu_custom_call.1} parent=65 // pred_check
            _
          $region79: #{tpu_custom_call.1} parent=65 // pred_check_branch
            %287 = sbr.rel (%p284) target = $region81
          $region80: #{tpu_custom_call.1} parent=65 // pred_region
            %s288 = sand.u32 1, 7
            %s289 = ssub.s32 1, %s288
            %s290 = scalar_lea.vmem %s261, %s289
            %s291 = ssub.s32 1, %s288
            %s292 = scalar_lea.vmem %s262, %s291 [#allocation2]
            %s293 = sshll.u32 1, %s288
            %s294 = ssub.s32 %s293, 1
            loop: start=0, step=1, limit=1
            $region82: #{tpu_custom_call.1} parent=80 // loop_pre_header
              _
            $region83: #{tpu_custom_call.1} parent=80 // loop_header
              %s296 = sphi 0, %s300
              %p297 = scmp.ge.s32.totalorder %s296, 1
              %s301 = sphi %s290, %s290
              %s302 = sphi %s292, %s292
            $region84: #{tpu_custom_call.1} parent=80 // loop_header_branch
              %299 = sbr.rel (%p297) target = $region88
            $region85: #{tpu_custom_call.1} parent=80 // loop_body
              %v303 = vld [vmem:[%s301] sm:%s294]
              %304 = vst [vmem:[%s302] sm:%s294] %v303
            $region86: #{tpu_custom_call.1} parent=80 // loop_footer
              %s300 = sadd.s32 1, %s296
            $region87: #{tpu_custom_call.1} parent=80 // loop_footer_branch
              %295 = sbr.rel target = $region83
            $region88: #{tpu_custom_call.1} parent=80 // loop_exit
              _
          $region81: #{tpu_custom_call.1} parent=65 // pred_fallthru
            _
        $region66: #{tpu_custom_call.1} parent=31 // pred_fallthru
          _
        // Predicated region
        $region67: #{tpu_custom_call.1} parent=31 // pred_check
          %p268 = pneg %p264
        $region68: #{tpu_custom_call.1} parent=31 // pred_check_branch
          %270 = sbr.rel (%p268) target = $region70
        $region69: #{tpu_custom_call.1} parent=31 // pred_region
          %s271 = sshll.u32 1, 1
          %s272 = ssub.s32 %s271, 1
          loop: start=0, step=1, limit=1
          $region71: #{tpu_custom_call.1} parent=69 // loop_pre_header
            _
          $region72: #{tpu_custom_call.1} parent=69 // loop_header
            %s274 = sphi 0, %s278
            %p275 = scmp.ge.s32.totalorder %s274, 1
            %s279 = sphi %s261, %s261
            %s280 = sphi %s262, %s262
          $region73: #{tpu_custom_call.1} parent=69 // loop_header_branch
            %277 = sbr.rel (%p275) target = $region77
          $region74: #{tpu_custom_call.1} parent=69 // loop_body
            %v281 = vld [vmem:[%s279] sm:%s272]
            %282 = vst [vmem:[%s280] sm:%s272] %v281
          $region75: #{tpu_custom_call.1} parent=69 // loop_footer
            %s278 = sadd.s32 1, %s274
          $region76: #{tpu_custom_call.1} parent=69 // loop_footer_branch
            %273 = sbr.rel target = $region72
          $region77: #{tpu_custom_call.1} parent=69 // loop_exit
            _
        $region70: #{tpu_custom_call.1} parent=31 // pred_fallthru
          _
        // Predicated region
        $region89: #{tpu_custom_call.1} parent=31 // pred_check
          _
        $region90: #{tpu_custom_call.1} parent=31 // pred_check_branch
          %307 = sbr.rel (0) target = $region92
        $region91: #{tpu_custom_call.1} parent=31 // pred_region
          %308 = vsyncadd [#allocation3], 16
        $region92: #{tpu_custom_call.1} parent=31 // pred_fallthru
          _
        %s309 = sadd.s32 %s188, 2
        %s310 = sshra.s32 %s309, 7
        %s311 = sand.u32 %s309, 127
        %s312 = sadd.s32 %s310, %s29
        %s313 = smul.u32 %s312, 128
        %s314 = sshra.s32 %s309, 7
        %s315 = sand.u32 %s309, 127
        %s316 = sadd.s32 %s313, %s315
        %s317 = sld [smem:[#allocation5 + %s316]]
        %p318 = scmp.gt.s32.totalorder %s317, 0
        %s319 = scalar_select %p318, %s317, 0
        %p320 = scmp.lt.s32.totalorder %s319, 49
        %s321 = scalar_select %p320, %s319, 49
        %s322 = scalar_lea.vmem %s1, %s321
        %s323 = scalar_lea.vmem [#allocation2], 2
        %p325 = scmp.lt.u32.totalorder 1, 8
        %p326 = pneg %p325
        // Predicated region
        $region93: #{tpu_custom_call.1} parent=31 // pred_check
          _
        $region94: #{tpu_custom_call.1} parent=31 // pred_check_branch
          %328 = sbr.rel (%p325) target = $region96
        $region95: #{tpu_custom_call.1} parent=31 // pred_region
          %s344 = sand.u32 1, 7
          %p345 = scmp.eq.s32.totalorder %s344, 0
          %p346 = pneg %p345
          // Predicated region
          $region108: #{tpu_custom_call.1} parent=95 // pred_check
            _
          $region109: #{tpu_custom_call.1} parent=95 // pred_check_branch
            %348 = sbr.rel (%p345) target = $region111
          $region110: #{tpu_custom_call.1} parent=95 // pred_region
            %s349 = sand.u32 1, 7
            %s350 = ssub.s32 1, %s349
            %s351 = scalar_lea.vmem %s322, %s350
            %s352 = ssub.s32 1, %s349
            %s353 = scalar_lea.vmem %s323, %s352 [#allocation2]
            %s354 = sshll.u32 1, %s349
            %s355 = ssub.s32 %s354, 1
            loop: start=0, step=1, limit=1
            $region112: #{tpu_custom_call.1} parent=110 // loop_pre_header
              _
            $region113: #{tpu_custom_call.1} parent=110 // loop_header
              %s357 = sphi 0, %s361
              %p358 = scmp.ge.s32.totalorder %s357, 1
              %s362 = sphi %s351, %s351
              %s363 = sphi %s353, %s353
            $region114: #{tpu_custom_call.1} parent=110 // loop_header_branch
              %360 = sbr.rel (%p358) target = $region118
            $region115: #{tpu_custom_call.1} parent=110 // loop_body
              %v364 = vld [vmem:[%s362] sm:%s355]
              %365 = vst [vmem:[%s363] sm:%s355] %v364
            $region116: #{tpu_custom_call.1} parent=110 // loop_footer
              %s361 = sadd.s32 1, %s357
            $region117: #{tpu_custom_call.1} parent=110 // loop_footer_branch
              %356 = sbr.rel target = $region113
            $region118: #{tpu_custom_call.1} parent=110 // loop_exit
              _
          $region111: #{tpu_custom_call.1} parent=95 // pred_fallthru
            _
        $region96: #{tpu_custom_call.1} parent=31 // pred_fallthru
          _
        // Predicated region
        $region97: #{tpu_custom_call.1} parent=31 // pred_check
          %p329 = pneg %p325
        $region98: #{tpu_custom_call.1} parent=31 // pred_check_branch
          %331 = sbr.rel (%p329) target = $region100
        $region99: #{tpu_custom_call.1} parent=31 // pred_region
          %s332 = sshll.u32 1, 1
          %s333 = ssub.s32 %s332, 1
          loop: start=0, step=1, limit=1
          $region101: #{tpu_custom_call.1} parent=99 // loop_pre_header
            _
          $region102: #{tpu_custom_call.1} parent=99 // loop_header
            %s335 = sphi 0, %s339
            %p336 = scmp.ge.s32.totalorder %s335, 1
            %s340 = sphi %s322, %s322
            %s341 = sphi %s323, %s323
          $region103: #{tpu_custom_call.1} parent=99 // loop_header_branch
            %338 = sbr.rel (%p336) target = $region107
          $region104: #{tpu_custom_call.1} parent=99 // loop_body
            %v342 = vld [vmem:[%s340] sm:%s333]
            %343 = vst [vmem:[%s341] sm:%s333] %v342
          $region105: #{tpu_custom_call.1} parent=99 // loop_footer
            %s339 = sadd.s32 1, %s335
          $region106: #{tpu_custom_call.1} parent=99 // loop_footer_branch
            %334 = sbr.rel target = $region102
          $region107: #{tpu_custom_call.1} parent=99 // loop_exit
            _
        $region100: #{tpu_custom_call.1} parent=31 // pred_fallthru
          _
        // Predicated region
        $region119: #{tpu_custom_call.1} parent=31 // pred_check
          _
        $region120: #{tpu_custom_call.1} parent=31 // pred_check_branch
          %368 = sbr.rel (0) target = $region122
        $region121: #{tpu_custom_call.1} parent=31 // pred_region
          %369 = vsyncadd [#allocation3], 16
        $region122: #{tpu_custom_call.1} parent=31 // pred_fallthru
          _
        %s370 = sadd.s32 %s188, 3
        %s371 = sshra.s32 %s370, 7
        %s372 = sand.u32 %s370, 127
        %s373 = sadd.s32 %s371, %s29
        %s374 = smul.u32 %s373, 128
        %s375 = sshra.s32 %s370, 7
        %s376 = sand.u32 %s370, 127
        %s377 = sadd.s32 %s374, %s376
        %s378 = sld [smem:[#allocation5 + %s377]]
        %p379 = scmp.gt.s32.totalorder %s378, 0
        %s380 = scalar_select %p379, %s378, 0
        %p381 = scmp.lt.s32.totalorder %s380, 49
        %s382 = scalar_select %p381, %s380, 49
        %s383 = scalar_lea.vmem %s1, %s382
        %s384 = scalar_lea.vmem [#allocation2], 3
        %p386 = scmp.lt.u32.totalorder 1, 8
        %p387 = pneg %p386
        // Predicated region
        $region123: #{tpu_custom_call.1} parent=31 // pred_check
          _
        $region124: #{tpu_custom_call.1} parent=31 // pred_check_branch
          %389 = sbr.rel (%p386) target = $region126
        $region125: #{tpu_custom_call.1} parent=31 // pred_region
          %s405 = sand.u32 1, 7
          %p406 = scmp.eq.s32.totalorder %s405, 0
          %p407 = pneg %p406
          // Predicated region
          $region138: #{tpu_custom_call.1} parent=125 // pred_check
            _
          $region139: #{tpu_custom_call.1} parent=125 // pred_check_branch
            %409 = sbr.rel (%p406) target = $region141
          $region140: #{tpu_custom_call.1} parent=125 // pred_region
            %s410 = sand.u32 1, 7
            %s411 = ssub.s32 1, %s410
            %s412 = scalar_lea.vmem %s383, %s411
            %s413 = ssub.s32 1, %s410
            %s414 = scalar_lea.vmem %s384, %s413 [#allocation2]
            %s415 = sshll.u32 1, %s410
            %s416 = ssub.s32 %s415, 1
            loop: start=0, step=1, limit=1
            $region142: #{tpu_custom_call.1} parent=140 // loop_pre_header
              _
            $region143: #{tpu_custom_call.1} parent=140 // loop_header
              %s418 = sphi 0, %s422
              %p419 = scmp.ge.s32.totalorder %s418, 1
              %s423 = sphi %s412, %s412
              %s424 = sphi %s414, %s414
            $region144: #{tpu_custom_call.1} parent=140 // loop_header_branch
              %421 = sbr.rel (%p419) target = $region148
            $region145: #{tpu_custom_call.1} parent=140 // loop_body
              %v425 = vld [vmem:[%s423] sm:%s416]
              %426 = vst [vmem:[%s424] sm:%s416] %v425
            $region146: #{tpu_custom_call.1} parent=140 // loop_footer
              %s422 = sadd.s32 1, %s418
            $region147: #{tpu_custom_call.1} parent=140 // loop_footer_branch
              %417 = sbr.rel target = $region143
            $region148: #{tpu_custom_call.1} parent=140 // loop_exit
              _
          $region141: #{tpu_custom_call.1} parent=125 // pred_fallthru
            _
        $region126: #{tpu_custom_call.1} parent=31 // pred_fallthru
          _
        // Predicated region
        $region127: #{tpu_custom_call.1} parent=31 // pred_check
          %p390 = pneg %p386
        $region128: #{tpu_custom_call.1} parent=31 // pred_check_branch
          %392 = sbr.rel (%p390) target = $region130
        $region129: #{tpu_custom_call.1} parent=31 // pred_region
          %s393 = sshll.u32 1, 1
          %s394 = ssub.s32 %s393, 1
          loop: start=0, step=1, limit=1
          $region131: #{tpu_custom_call.1} parent=129 // loop_pre_header
            _
          $region132: #{tpu_custom_call.1} parent=129 // loop_header
            %s396 = sphi 0, %s400
            %p397 = scmp.ge.s32.totalorder %s396, 1
            %s401 = sphi %s383, %s383
            %s402 = sphi %s384, %s384
          $region133: #{tpu_custom_call.1} parent=129 // loop_header_branch
            %399 = sbr.rel (%p397) target = $region137
          $region134: #{tpu_custom_call.1} parent=129 // loop_body
            %v403 = vld [vmem:[%s401] sm:%s394]
            %404 = vst [vmem:[%s402] sm:%s394] %v403
          $region135: #{tpu_custom_call.1} parent=129 // loop_footer
            %s400 = sadd.s32 1, %s396
          $region136: #{tpu_custom_call.1} parent=129 // loop_footer_branch
            %395 = sbr.rel target = $region132
          $region137: #{tpu_custom_call.1} parent=129 // loop_exit
            _
        $region130: #{tpu_custom_call.1} parent=31 // pred_fallthru
          _
        // Predicated region
        $region149: #{tpu_custom_call.1} parent=31 // pred_check
          _
        $region150: #{tpu_custom_call.1} parent=31 // pred_check_branch
          %429 = sbr.rel (0) target = $region152
        $region151: #{tpu_custom_call.1} parent=31 // pred_region
          %430 = vsyncadd [#allocation3], 16
        $region152: #{tpu_custom_call.1} parent=31 // pred_fallthru
          _
        %s431 = sadd.s32 %s188, 4
        %s432 = sshra.s32 %s431, 7
        %s433 = sand.u32 %s431, 127
        %s434 = sadd.s32 %s432, %s29
        %s435 = smul.u32 %s434, 128
        %s436 = sshra.s32 %s431, 7
        %s437 = sand.u32 %s431, 127
        %s438 = sadd.s32 %s435, %s437
        %s439 = sld [smem:[#allocation5 + %s438]]
        %p440 = scmp.gt.s32.totalorder %s439, 0
        %s441 = scalar_select %p440, %s439, 0
        %p442 = scmp.lt.s32.totalorder %s441, 49
        %s443 = scalar_select %p442, %s441, 49
        %s444 = scalar_lea.vmem %s1, %s443
        %s445 = scalar_lea.vmem [#allocation2], 4
        %p447 = scmp.lt.u32.totalorder 1, 8
        %p448 = pneg %p447
        // Predicated region
        $region153: #{tpu_custom_call.1} parent=31 // pred_check
          _
        $region154: #{tpu_custom_call.1} parent=31 // pred_check_branch
          %450 = sbr.rel (%p447) target = $region156
        $region155: #{tpu_custom_call.1} parent=31 // pred_region
          %s466 = sand.u32 1, 7
          %p467 = scmp.eq.s32.totalorder %s466, 0
          %p468 = pneg %p467
          // Predicated region
          $region168: #{tpu_custom_call.1} parent=155 // pred_check
            _
          $region169: #{tpu_custom_call.1} parent=155 // pred_check_branch
            %470 = sbr.rel (%p467) target = $region171
          $region170: #{tpu_custom_call.1} parent=155 // pred_region
            %s471 = sand.u32 1, 7
            %s472 = ssub.s32 1, %s471
            %s473 = scalar_lea.vmem %s444, %s472
            %s474 = ssub.s32 1, %s471
            %s475 = scalar_lea.vmem %s445, %s474 [#allocation2]
            %s476 = sshll.u32 1, %s471
            %s477 = ssub.s32 %s476, 1
            loop: start=0, step=1, limit=1
            $region172: #{tpu_custom_call.1} parent=170 // loop_pre_header
              _
            $region173: #{tpu_custom_call.1} parent=170 // loop_header
              %s479 = sphi 0, %s483
              %p480 = scmp.ge.s32.totalorder %s479, 1
              %s484 = sphi %s473, %s473
              %s485 = sphi %s475, %s475
            $region174: #{tpu_custom_call.1} parent=170 // loop_header_branch
              %482 = sbr.rel (%p480) target = $region178
            $region175: #{tpu_custom_call.1} parent=170 // loop_body
              %v486 = vld [vmem:[%s484] sm:%s477]
              %487 = vst [vmem:[%s485] sm:%s477] %v486
            $region176: #{tpu_custom_call.1} parent=170 // loop_footer
              %s483 = sadd.s32 1, %s479
            $region177: #{tpu_custom_call.1} parent=170 // loop_footer_branch
              %478 = sbr.rel target = $region173
            $region178: #{tpu_custom_call.1} parent=170 // loop_exit
              _
          $region171: #{tpu_custom_call.1} parent=155 // pred_fallthru
            _
        $region156: #{tpu_custom_call.1} parent=31 // pred_fallthru
          _
        // Predicated region
        $region157: #{tpu_custom_call.1} parent=31 // pred_check
          %p451 = pneg %p447
        $region158: #{tpu_custom_call.1} parent=31 // pred_check_branch
          %453 = sbr.rel (%p451) target = $region160
        $region159: #{tpu_custom_call.1} parent=31 // pred_region
          %s454 = sshll.u32 1, 1
          %s455 = ssub.s32 %s454, 1
          loop: start=0, step=1, limit=1
          $region161: #{tpu_custom_call.1} parent=159 // loop_pre_header
            _
          $region162: #{tpu_custom_call.1} parent=159 // loop_header
            %s457 = sphi 0, %s461
            %p458 = scmp.ge.s32.totalorder %s457, 1
            %s462 = sphi %s444, %s444
            %s463 = sphi %s445, %s445
          $region163: #{tpu_custom_call.1} parent=159 // loop_header_branch
            %460 = sbr.rel (%p458) target = $region167
          $region164: #{tpu_custom_call.1} parent=159 // loop_body
            %v464 = vld [vmem:[%s462] sm:%s455]
            %465 = vst [vmem:[%s463] sm:%s455] %v464
          $region165: #{tpu_custom_call.1} parent=159 // loop_footer
            %s461 = sadd.s32 1, %s457
          $region166: #{tpu_custom_call.1} parent=159 // loop_footer_branch
            %456 = sbr.rel target = $region162
          $region167: #{tpu_custom_call.1} parent=159 // loop_exit
            _
        $region160: #{tpu_custom_call.1} parent=31 // pred_fallthru
          _
        // Predicated region
        $region179: #{tpu_custom_call.1} parent=31 // pred_check
          _
        $region180: #{tpu_custom_call.1} parent=31 // pred_check_branch
          %490 = sbr.rel (0) target = $region182
        $region181: #{tpu_custom_call.1} parent=31 // pred_region
          %491 = vsyncadd [#allocation3], 16
        $region182: #{tpu_custom_call.1} parent=31 // pred_fallthru
          _
        %s492 = sadd.s32 %s188, 5
        %s493 = sshra.s32 %s492, 7
        %s494 = sand.u32 %s492, 127
        %s495 = sadd.s32 %s493, %s29
        %s496 = smul.u32 %s495, 128
        %s497 = sshra.s32 %s492, 7
        %s498 = sand.u32 %s492, 127
        %s499 = sadd.s32 %s496, %s498
        %s500 = sld [smem:[#allocation5 + %s499]]
        %p501 = scmp.gt.s32.totalorder %s500, 0
        %s502 = scalar_select %p501, %s500, 0
        %p503 = scmp.lt.s32.totalorder %s502, 49
        %s504 = scalar_select %p503, %s502, 49
        %s505 = scalar_lea.vmem %s1, %s504
        %s506 = scalar_lea.vmem [#allocation2], 5
        %p508 = scmp.lt.u32.totalorder 1, 8
        %p509 = pneg %p508
        // Predicated region
        $region183: #{tpu_custom_call.1} parent=31 // pred_check
          _
        $region184: #{tpu_custom_call.1} parent=31 // pred_check_branch
          %511 = sbr.rel (%p508) target = $region186
        $region185: #{tpu_custom_call.1} parent=31 // pred_region
          %s527 = sand.u32 1, 7
          %p528 = scmp.eq.s32.totalorder %s527, 0
          %p529 = pneg %p528
          // Predicated region
          $region198: #{tpu_custom_call.1} parent=185 // pred_check
            _
          $region199: #{tpu_custom_call.1} parent=185 // pred_check_branch
            %531 = sbr.rel (%p528) target = $region201
          $region200: #{tpu_custom_call.1} parent=185 // pred_region
            %s532 = sand.u32 1, 7
            %s533 = ssub.s32 1, %s532
            %s534 = scalar_lea.vmem %s505, %s533
            %s535 = ssub.s32 1, %s532
            %s536 = scalar_lea.vmem %s506, %s535 [#allocation2]
            %s537 = sshll.u32 1, %s532
            %s538 = ssub.s32 %s537, 1
            loop: start=0, step=1, limit=1
            $region202: #{tpu_custom_call.1} parent=200 // loop_pre_header
              _
            $region203: #{tpu_custom_call.1} parent=200 // loop_header
              %s540 = sphi 0, %s544
              %p541 = scmp.ge.s32.totalorder %s540, 1
              %s545 = sphi %s534, %s534
              %s546 = sphi %s536, %s536
            $region204: #{tpu_custom_call.1} parent=200 // loop_header_branch
              %543 = sbr.rel (%p541) target = $region208
            $region205: #{tpu_custom_call.1} parent=200 // loop_body
              %v547 = vld [vmem:[%s545] sm:%s538]
              %548 = vst [vmem:[%s546] sm:%s538] %v547
            $region206: #{tpu_custom_call.1} parent=200 // loop_footer
              %s544 = sadd.s32 1, %s540
            $region207: #{tpu_custom_call.1} parent=200 // loop_footer_branch
              %539 = sbr.rel target = $region203
            $region208: #{tpu_custom_call.1} parent=200 // loop_exit
              _
          $region201: #{tpu_custom_call.1} parent=185 // pred_fallthru
            _
        $region186: #{tpu_custom_call.1} parent=31 // pred_fallthru
          _
        // Predicated region
        $region187: #{tpu_custom_call.1} parent=31 // pred_check
          %p512 = pneg %p508
        $region188: #{tpu_custom_call.1} parent=31 // pred_check_branch
          %514 = sbr.rel (%p512) target = $region190
        $region189: #{tpu_custom_call.1} parent=31 // pred_region
          %s515 = sshll.u32 1, 1
          %s516 = ssub.s32 %s515, 1
          loop: start=0, step=1, limit=1
          $region191: #{tpu_custom_call.1} parent=189 // loop_pre_header
            _
          $region192: #{tpu_custom_call.1} parent=189 // loop_header
            %s518 = sphi 0, %s522
            %p519 = scmp.ge.s32.totalorder %s518, 1
            %s523 = sphi %s505, %s505
            %s524 = sphi %s506, %s506
          $region193: #{tpu_custom_call.1} parent=189 // loop_header_branch
            %521 = sbr.rel (%p519) target = $region197
          $region194: #{tpu_custom_call.1} parent=189 // loop_body
            %v525 = vld [vmem:[%s523] sm:%s516]
            %526 = vst [vmem:[%s524] sm:%s516] %v525
          $region195: #{tpu_custom_call.1} parent=189 // loop_footer
            %s522 = sadd.s32 1, %s518
          $region196: #{tpu_custom_call.1} parent=189 // loop_footer_branch
            %517 = sbr.rel target = $region192
          $region197: #{tpu_custom_call.1} parent=189 // loop_exit
            _
        $region190: #{tpu_custom_call.1} parent=31 // pred_fallthru
          _
        // Predicated region
        $region209: #{tpu_custom_call.1} parent=31 // pred_check
          _
        $region210: #{tpu_custom_call.1} parent=31 // pred_check_branch
          %551 = sbr.rel (0) target = $region212
        $region211: #{tpu_custom_call.1} parent=31 // pred_region
          %552 = vsyncadd [#allocation3], 16
        $region212: #{tpu_custom_call.1} parent=31 // pred_fallthru
          _
        %s553 = sadd.s32 %s188, 6
        %s554 = sshra.s32 %s553, 7
        %s555 = sand.u32 %s553, 127
        %s556 = sadd.s32 %s554, %s29
        %s557 = smul.u32 %s556, 128
        %s558 = sshra.s32 %s553, 7
        %s559 = sand.u32 %s553, 127
        %s560 = sadd.s32 %s557, %s559
        %s561 = sld [smem:[#allocation5 + %s560]]
        %p562 = scmp.gt.s32.totalorder %s561, 0
        %s563 = scalar_select %p562, %s561, 0
        %p564 = scmp.lt.s32.totalorder %s563, 49
        %s565 = scalar_select %p564, %s563, 49
        %s566 = scalar_lea.vmem %s1, %s565
        %s567 = scalar_lea.vmem [#allocation2], 6
        %p569 = scmp.lt.u32.totalorder 1, 8
        %p570 = pneg %p569
        // Predicated region
        $region213: #{tpu_custom_call.1} parent=31 // pred_check
          _
        $region214: #{tpu_custom_call.1} parent=31 // pred_check_branch
          %572 = sbr.rel (%p569) target = $region216
        $region215: #{tpu_custom_call.1} parent=31 // pred_region
          %s588 = sand.u32 1, 7
          %p589 = scmp.eq.s32.totalorder %s588, 0
          %p590 = pneg %p589
          // Predicated region
          $region228: #{tpu_custom_call.1} parent=215 // pred_check
            _
          $region229: #{tpu_custom_call.1} parent=215 // pred_check_branch
            %592 = sbr.rel (%p589) target = $region231
          $region230: #{tpu_custom_call.1} parent=215 // pred_region
            %s593 = sand.u32 1, 7
            %s594 = ssub.s32 1, %s593
            %s595 = scalar_lea.vmem %s566, %s594
            %s596 = ssub.s32 1, %s593
            %s597 = scalar_lea.vmem %s567, %s596 [#allocation2]
            %s598 = sshll.u32 1, %s593
            %s599 = ssub.s32 %s598, 1
            loop: start=0, step=1, limit=1
            $region232: #{tpu_custom_call.1} parent=230 // loop_pre_header
              _
            $region233: #{tpu_custom_call.1} parent=230 // loop_header
              %s601 = sphi 0, %s605
              %p602 = scmp.ge.s32.totalorder %s601, 1
              %s606 = sphi %s595, %s595
              %s607 = sphi %s597, %s597
            $region234: #{tpu_custom_call.1} parent=230 // loop_header_branch
              %604 = sbr.rel (%p602) target = $region238
            $region235: #{tpu_custom_call.1} parent=230 // loop_body
              %v608 = vld [vmem:[%s606] sm:%s599]
              %609 = vst [vmem:[%s607] sm:%s599] %v608
            $region236: #{tpu_custom_call.1} parent=230 // loop_footer
              %s605 = sadd.s32 1, %s601
            $region237: #{tpu_custom_call.1} parent=230 // loop_footer_branch
              %600 = sbr.rel target = $region233
            $region238: #{tpu_custom_call.1} parent=230 // loop_exit
              _
          $region231: #{tpu_custom_call.1} parent=215 // pred_fallthru
            _
        $region216: #{tpu_custom_call.1} parent=31 // pred_fallthru
          _
        // Predicated region
        $region217: #{tpu_custom_call.1} parent=31 // pred_check
          %p573 = pneg %p569
        $region218: #{tpu_custom_call.1} parent=31 // pred_check_branch
          %575 = sbr.rel (%p573) target = $region220
        $region219: #{tpu_custom_call.1} parent=31 // pred_region
          %s576 = sshll.u32 1, 1
          %s577 = ssub.s32 %s576, 1
          loop: start=0, step=1, limit=1
          $region221: #{tpu_custom_call.1} parent=219 // loop_pre_header
            _
          $region222: #{tpu_custom_call.1} parent=219 // loop_header
            %s579 = sphi 0, %s583
            %p580 = scmp.ge.s32.totalorder %s579, 1
            %s584 = sphi %s566, %s566
            %s585 = sphi %s567, %s567
          $region223: #{tpu_custom_call.1} parent=219 // loop_header_branch
            %582 = sbr.rel (%p580) target = $region227
          $region224: #{tpu_custom_call.1} parent=219 // loop_body
            %v586 = vld [vmem:[%s584] sm:%s577]
            %587 = vst [vmem:[%s585] sm:%s577] %v586
          $region225: #{tpu_custom_call.1} parent=219 // loop_footer
            %s583 = sadd.s32 1, %s579
          $region226: #{tpu_custom_call.1} parent=219 // loop_footer_branch
            %578 = sbr.rel target = $region222
          $region227: #{tpu_custom_call.1} parent=219 // loop_exit
            _
        $region220: #{tpu_custom_call.1} parent=31 // pred_fallthru
          _
        // Predicated region
        $region239: #{tpu_custom_call.1} parent=31 // pred_check
          _
        $region240: #{tpu_custom_call.1} parent=31 // pred_check_branch
          %612 = sbr.rel (0) target = $region242
        $region241: #{tpu_custom_call.1} parent=31 // pred_region
          %613 = vsyncadd [#allocation3], 16
        $region242: #{tpu_custom_call.1} parent=31 // pred_fallthru
          _
        %s614 = sadd.s32 %s188, 7
        %s615 = sshra.s32 %s614, 7
        %s616 = sand.u32 %s614, 127
        %s617 = sadd.s32 %s615, %s29
        %s618 = smul.u32 %s617, 128
        %s619 = sshra.s32 %s614, 7
        %s620 = sand.u32 %s614, 127
        %s621 = sadd.s32 %s618, %s620
        %s622 = sld [smem:[#allocation5 + %s621]]
        %p623 = scmp.gt.s32.totalorder %s622, 0
        %s624 = scalar_select %p623, %s622, 0
        %p625 = scmp.lt.s32.totalorder %s624, 49
        %s626 = scalar_select %p625, %s624, 49
        %s627 = scalar_lea.vmem %s1, %s626
        %s628 = scalar_lea.vmem [#allocation2], 7
        %p630 = scmp.lt.u32.totalorder 1, 8
        %p631 = pneg %p630
        // Predicated region
        $region243: #{tpu_custom_call.1} parent=31 // pred_check
          _
        $region244: #{tpu_custom_call.1} parent=31 // pred_check_branch
          %633 = sbr.rel (%p630) target = $region246
        $region245: #{tpu_custom_call.1} parent=31 // pred_region
          %s649 = sand.u32 1, 7
          %p650 = scmp.eq.s32.totalorder %s649, 0
          %p651 = pneg %p650
          // Predicated region
          $region258: #{tpu_custom_call.1} parent=245 // pred_check
            _
          $region259: #{tpu_custom_call.1} parent=245 // pred_check_branch
            %653 = sbr.rel (%p650) target = $region261
          $region260: #{tpu_custom_call.1} parent=245 // pred_region
            %s654 = sand.u32 1, 7
            %s655 = ssub.s32 1, %s654
            %s656 = scalar_lea.vmem %s627, %s655
            %s657 = ssub.s32 1, %s654
            %s658 = scalar_lea.vmem %s628, %s657 [#allocation2]
            %s659 = sshll.u32 1, %s654
            %s660 = ssub.s32 %s659, 1
            loop: start=0, step=1, limit=1
            $region262: #{tpu_custom_call.1} parent=260 // loop_pre_header
              _
            $region263: #{tpu_custom_call.1} parent=260 // loop_header
              %s662 = sphi 0, %s666
              %p663 = scmp.ge.s32.totalorder %s662, 1
              %s667 = sphi %s656, %s656
              %s668 = sphi %s658, %s658
            $region264: #{tpu_custom_call.1} parent=260 // loop_header_branch
              %665 = sbr.rel (%p663) target = $region268
            $region265: #{tpu_custom_call.1} parent=260 // loop_body
              %v669 = vld [vmem:[%s667] sm:%s660]
              %670 = vst [vmem:[%s668] sm:%s660] %v669
            $region266: #{tpu_custom_call.1} parent=260 // loop_footer
              %s666 = sadd.s32 1, %s662
            $region267: #{tpu_custom_call.1} parent=260 // loop_footer_branch
              %661 = sbr.rel target = $region263
            $region268: #{tpu_custom_call.1} parent=260 // loop_exit
              _
          $region261: #{tpu_custom_call.1} parent=245 // pred_fallthru
            _
        $region246: #{tpu_custom_call.1} parent=31 // pred_fallthru
          _
        // Predicated region
        $region247: #{tpu_custom_call.1} parent=31 // pred_check
          %p634 = pneg %p630
        $region248: #{tpu_custom_call.1} parent=31 // pred_check_branch
          %636 = sbr.rel (%p634) target = $region250
        $region249: #{tpu_custom_call.1} parent=31 // pred_region
          %s637 = sshll.u32 1, 1
          %s638 = ssub.s32 %s637, 1
          loop: start=0, step=1, limit=1
          $region251: #{tpu_custom_call.1} parent=249 // loop_pre_header
            _
          $region252: #{tpu_custom_call.1} parent=249 // loop_header
            %s640 = sphi 0, %s644
            %p641 = scmp.ge.s32.totalorder %s640, 1
            %s645 = sphi %s627, %s627
            %s646 = sphi %s628, %s628
          $region253: #{tpu_custom_call.1} parent=249 // loop_header_branch
            %643 = sbr.rel (%p641) target = $region257
          $region254: #{tpu_custom_call.1} parent=249 // loop_body
            %v647 = vld [vmem:[%s645] sm:%s638]
            %648 = vst [vmem:[%s646] sm:%s638] %v647
          $region255: #{tpu_custom_call.1} parent=249 // loop_footer
            %s644 = sadd.s32 1, %s640
          $region256: #{tpu_custom_call.1} parent=249 // loop_footer_branch
            %639 = sbr.rel target = $region252
          $region257: #{tpu_custom_call.1} parent=249 // loop_exit
            _
        $region250: #{tpu_custom_call.1} parent=31 // pred_fallthru
          _
        // Predicated region
        $region269: #{tpu_custom_call.1} parent=31 // pred_check
          _
        $region270: #{tpu_custom_call.1} parent=31 // pred_check_branch
          %673 = sbr.rel (0) target = $region272
        $region271: #{tpu_custom_call.1} parent=31 // pred_region
          %674 = vsyncadd [#allocation3], 16
        $region272: #{tpu_custom_call.1} parent=31 // pred_fallthru
          _
        %s675 = smul.u32 1, 1
        %s676 = sshll.u32 %s675, 4
        %677 = dma.done [#allocation3], %s676
        %s678 = sshll.u32 %s675, 4
        %679 = dma.done [#allocation3], %s678
        %s680 = sshll.u32 %s675, 4
        %681 = dma.done [#allocation3], %s680
        %s682 = sshll.u32 %s675, 4
        %683 = dma.done [#allocation3], %s682
        %s684 = sshll.u32 %s675, 4
        %685 = dma.done [#allocation3], %s684
        %s686 = sshll.u32 %s675, 4
        %687 = dma.done [#allocation3], %s686
        %s688 = sshll.u32 %s675, 4
        %689 = dma.done [#allocation3], %s688
        %s690 = sshll.u32 %s675, 4
        %691 = dma.done [#allocation3], %s690
        %v692 = vld [vmem:[#allocation2] sm:$0xff]
        %v693 = vld [vmem:[%s187] sm:$0xff]
        %v694 = vadd.f32 %v692, %v693
        %vm695 = vcmask 261120
        %v696 = vsel %vm695, %v694, 0.0
        %697 = vadd.xlane.f32.xlu0 %v696
        %v698 = vpop.xlane.xlu0 %697
        %v699 = vrcp.pop 32.0
        %v700 = vmul.f32 %v698, %v699
        %v701 = vmul.f32 %v694, %v694
        %v702 = vsel %vm695, %v701, 0.0
        %703 = vadd.xlane.f32.xlu0 %v702
        %v704 = vpop.xlane.xlu0 %703
        %v705 = vmul.f32 %v704, %v699
        %v706 = vmul.f32 %v700, %v700
        %v707 = vsub.f32 %v705, %v706
        %v708 = vsub.f32 %v694, %v700
        %v709 = vadd.f32 %v707, 1e-12
        %v710 = vrsqrt.pop %v709
        %v711 = vmul.f32 %v708, %v710
        %v712 = vld [vmem:[%s3] sm:$0x1]
        %v714 = vlaneseq
        %v715 = vshrl.u32 %v714, 7
        %v716 = vsub.s32 0, %v715
        %v717 = vrot.slane %v712, %v716
        %v719 = vmul.f32 %v717, %v711
        %v720 = vld [vmem:[%s4] sm:$0x1]
        %v722 = vlaneseq
        %v723 = vshrl.u32 %v722, 7
        %v724 = vsub.s32 0, %v723
        %v725 = vrot.slane %v720, %v724
        %v727 = vadd.f32 %v719, %v725
        %728 = vst.msk [vmem:[%s183] sm:$0xff] %vm695, %v727
        %s729 = sand.u32 %s115, 1
        %s730 = scalar_lea.sflag [#allocation7], %s729
        %s731 = sand.u32 %s115, 1
        %s732 = smul.addr %s731, 8
        %s733 = scalar_lea.vmem [#allocation6], %s732
        // Predicated region
        $region273: #{tpu_custom_call.1} parent=31 // pred_check
          %p734 = pneg %p125
        $region274: #{tpu_custom_call.1} parent=31 // pred_check_branch
          %736 = sbr.rel (%p734) target = $region276
        $region275: #{tpu_custom_call.1} parent=31 // pred_region
          %s738 = ssub.s32 128, 128
          %739 = vsyncadd %s730, %s738
          %s740 = sadd.s32 %s30, %s29
          %s741 = smul.addr %s740, 128
          %s742 = scalar_lea.hbm %s5, %s741
          %s744 = sshll.u32 %s733, 4
          %s745 = int_to_ptr.vmem [resolvable:$true] %s744
          %747 = dma.vmem_to_hbm [thread:$0]  %s745, 128, %s742, %s730
        $region276: #{tpu_custom_call.1} parent=31 // pred_fallthru
          _
      $region32: #{tpu_custom_call.1} parent=5 // pred_fallthru
        _
      %p748 = scmp.le.s32.totalorder 2, %s20
      // Predicated region
      $region277: #{tpu_custom_call.1} parent=5 // pred_check
        %p749 = pneg %p748
      $region278: #{tpu_custom_call.1} parent=5 // pred_check_branch
        %751 = sbr.rel (%p749) target = $region280
      $region279: #{tpu_custom_call.1} parent=5 // pred_region
        %s752 = ssub.s32 %s20, 2
        // Predicated region
        $region281: #{tpu_custom_call.1} parent=279 // pred_check
          %p753 = pneg %p131
        $region282: #{tpu_custom_call.1} parent=279 // pred_check_branch
          %755 = sbr.rel (%p753) target = $region284
        $region283: #{tpu_custom_call.1} parent=279 // pred_region
          %s756 = sand.u32 %s116, 1
          %s757 = scalar_lea.sflag [#allocation7], %s756
          %s758 = sand.u32 %s116, 1
          %s759 = smul.addr %s758, 8
          %s760 = scalar_lea.vmem [#allocation6], %s759
          %761 = dma.done %s757, 128
        $region284: #{tpu_custom_call.1} parent=279 // pred_fallthru
          _
      $region280: #{tpu_custom_call.1} parent=5 // pred_fallthru
        _
    $region6: #{tpu_custom_call.1} parent=1 // loop_footer
      %s24 = sadd.s32 1, %s20
    $region7: #{tpu_custom_call.1} parent=1 // loop_footer_branch
      %19 = sbr.rel target = $region3
    $region8: #{tpu_custom_call.1} parent=1 // loop_exit
      _
    %762 = vsyncpa [#allocation7], 1
    %s763 = scalar_lea.sflag [#allocation7], 1
    %764 = vsyncpa %s763, 1
  %765 = vsyncmov [#allocation3]
  %s766 = vpop.sfrf %765
  %p767 = scmp.eq.s32.totalorder %s766, 0
  %p768 = pneg %p767
  %770 = shalt.err (%p768)

</llo_original>
